<compile_context>
chip_gen: v7x
topology: tpu7x:2x2x1
jax: 0.10.0
libtpu: 0.0.40
codegen_flags: <defaults>
</compile_context>

<pallas_src>
import functools

import jax
import jax.numpy as jnp
from jax.experimental import pallas as pl
from jax.experimental.pallas import tpu as pltpu

IMG_C, IMG_H, IMG_W = 1, 28, 28
IN_DIM = IMG_C * IMG_H * IMG_W   # 784
H1, H2, OUT = 512, 256, 1
assert OUT == 1, "layer-3 VPU reduction below relies on a single output column"


def _round_up(x, m):
    return (x + m - 1) // m * m


def _leaky_relu(x, slope=0.2):
    # max(x, slope*x) == LeakyReLU for 0 < slope < 1: 2 VALU ops vs 3 for where().
    return jnp.maximum(x, x * jnp.asarray(slope, x.dtype))


def _act_dtype():
    """bf16 epilogue on chips with a bf16 VPU (v6e/v7x); f32 on v5e."""
    try:
        kind = jax.devices()[0].device_kind.lower()
    except Exception:
        return jnp.float32
    return jnp.float32 if "v5" in kind else jnp.bfloat16


def _choose_tm(B):
    """Batch tile: big enough to amortize the ~0.35us/step overhead, capped so
    VMEM stays ~12 MiB even on v7x (64 MiB), and split into >=2 grid steps for
    non-trivial B so v7x's two TensorCores both get work."""
    tm = min(1024, _round_up(max(B, 1), 16))
    if B > 16 and _round_up(B, tm) // tm < 2:
        tm = max(16, _round_up((B + 1) // 2, 8))
    return tm


def disc_kernel(x_ref, w1_ref, b1_ref, w2_ref, b2_ref, w3_ref, b3_ref, o_ref,
                *, act_dtype):
    """One batch tile of the fused 3-layer MLP discriminator (all in VMEM)."""
    # Layer 1: x streamed from HBM once in its native f32; cast to bf16 in
    # VMEM for the MXU, f32 accumulation.
    x = x_ref[...].astype(jnp.bfloat16)                     # (tm, 784)
    h1 = jnp.dot(x, w1_ref[...], preferred_element_type=jnp.float32)
    h1 = _leaky_relu(h1.astype(act_dtype) + b1_ref[...].astype(act_dtype))

    # Layer 2: bf16 operands on the MXU, f32 accumulation.
    h2 = jnp.dot(h1.astype(jnp.bfloat16), w2_ref[...],
                 preferred_element_type=jnp.float32)
    h2 = _leaky_relu(h2 + b2_ref[...])                      # (tm, 256) f32

    # Layer 3 (N=1): VPU multiply + XLU lane reduction instead of a nearly
    # empty MXU pass; f32 end to end, EUP sigmoid.
    logits = jnp.sum(h2 * w3_ref[...], axis=-1, keepdims=True) + b3_ref[...]
    o_ref[...] = jax.nn.sigmoid(logits)                     # (tm, 1) f32


def prepare_params(params):
    """One-time conversion of f32 params to kernel-ready dtypes/layouts.

    Hoisted out of the per-call path so no weight cast/pad HBM traffic is paid
    on every forward."""
    w1, b1, w2, b2, w3, b3 = params
    return (
        w1.astype(jnp.bfloat16),                  # (784, 512) MXU operand
        b1.reshape(1, H1).astype(jnp.float32),
        w2.astype(jnp.bfloat16),                  # (512, 256) MXU operand
        b2.reshape(1, H2).astype(jnp.float32),
        w3.reshape(1, H2).astype(jnp.float32),    # row vector for the VPU head
        b3.reshape(1, OUT).astype(jnp.float32),
    )


def discriminator_forward(img, kernel_params, *, tm=None):
    """img: (B, 1, 28, 28) float32 NCHW.  Returns (B, 1) probabilities."""
    w1, b1, w2, b2, w3, b3 = kernel_params
    B = img.shape[0]
    x = img.reshape(B, IN_DIM).astype(jnp.float32)          # (B, 784), no K pad

    if tm is None:
        tm = _choose_tm(B)
    B_pad = _round_up(B, tm)
    if B_pad != B:
        x = jnp.pad(x, ((0, B_pad - B), (0, 0)))

    kernel = functools.partial(disc_kernel, act_dtype=_act_dtype())
    out = pl.pallas_call(
        kernel,
        out_shape=jax.ShapeDtypeStruct((B_pad, OUT), jnp.float32),
        grid_spec=pltpu.PrefetchScalarGridSpec(
            num_scalar_prefetch=0,
            grid=(B_pad // tm,),
            in_specs=[
                pl.BlockSpec((tm, IN_DIM), lambda i: (i, 0)),   # x tile (f32)
                pl.BlockSpec((IN_DIM, H1), lambda i: (0, 0)),   # W1 bf16 (resident)
                pl.BlockSpec((1, H1),      lambda i: (0, 0)),   # b1
                pl.BlockSpec((H1, H2),     lambda i: (0, 0)),   # W2 bf16 (resident)
                pl.BlockSpec((1, H2),      lambda i: (0, 0)),   # b2
                pl.BlockSpec((1, H2),      lambda i: (0, 0)),   # W3 row (f32)
                pl.BlockSpec((1, OUT),     lambda i: (0, 0)),   # b3
            ],
            out_specs=pl.BlockSpec((tm, OUT), lambda i: (i, 0)),
        ),
        compiler_params=pltpu.CompilerParams(
            dimension_semantics=("parallel",),      # batch tiles -> both TCs on v7x
            vmem_limit_bytes=48 * 1024 * 1024,      # headroom for tm up to 1024
        ),
    )(x, w1, b1, w2, b2, w3, b3)
    return out[:B]


def init_params(key):
    """Deterministic parameter init (PyTorch nn.Linear default-style uniform)."""
    ks = jax.random.split(key, 6)

    def lin(kw, kb, fan_in, fan_out):
        bound = 1.0 / jnp.sqrt(fan_in)
        w = jax.random.uniform(kw, (fan_in, fan_out), jnp.float32, -bound, bound)
        b = jax.random.uniform(kb, (1, fan_out), jnp.float32, -bound, bound)
        return w, b

    w1, b1 = lin(ks[0], ks[1], IN_DIM, H1)
    w2, b2 = lin(ks[2], ks[3], H1, H2)
    w3, b3 = lin(ks[4], ks[5], H2, OUT)
    return (w1, b1, w2, b2, w3, b3)


def reference_forward(img, params):
    """Pure-JAX f32 reference for correctness."""
    w1, b1, w2, b2, w3, b3 = params
    x = img.reshape(img.shape[0], IN_DIM).astype(jnp.float32)
    h1 = jnp.where(x @ w1 + b1 > 0, x @ w1 + b1, 0.2 * (x @ w1 + b1))
    h2 = jnp.where(h1 @ w2 + b2 > 0, h1 @ w2 + b2, 0.2 * (h1 @ w2 + b2))
    return jax.nn.sigmoid(h2 @ w3 + b3)


if __name__ == "__main__":
    key = jax.random.PRNGKey(0)
    k_img, k_par = jax.random.split(key)

    B = 8
    img = jax.random.normal(k_img, (B, IMG_C, IMG_H, IMG_W), jnp.float32)
    params = init_params(k_par)
    kparams = prepare_params(params)     # one-time weight cast, reused per call

    out = discriminator_forward(img, kparams)
    out = jax.block_until_ready(out)

    ref = reference_forward(img, params)
    assert out.shape == (B, 1)
    # bf16 matmul operands (f32 accumulation) => loosened tolerance vs f32 ref.
    assert jnp.allclose(out, ref, atol=1e-2, rtol=1e-2), "mismatch vs reference"

    print("KERNEL_OK")
</pallas_src>

<mosaic_0001>
module attributes {stable_mosaic.version = 11 : i64} {
  func.func @disc_kernel(%arg0: i32, %arg1: memref<16x784xf32, #tpu.memory_space<vmem>>, %arg2: memref<784x512xbf16, #tpu.memory_space<vmem>>, %arg3: memref<1x512xf32, #tpu.memory_space<vmem>>, %arg4: memref<512x256xbf16, #tpu.memory_space<vmem>>, %arg5: memref<1x256xf32, #tpu.memory_space<vmem>>, %arg6: memref<1x256xf32, #tpu.memory_space<vmem>>, %arg7: memref<1x1xf32, #tpu.memory_space<vmem>>, %arg8: memref<16x1xf32, #tpu.memory_space<vmem>>) attributes {dimension_semantics = [#tpu.dimension_semantics<parallel>], iteration_bounds = array<i64: 1>, scalar_prefetch = 0 : i64, scratch_operands = 0 : i64, tpu.core_type = #tpu.core_type<tc>, window_params = [{transform_indices = @transform_0, window_bounds = array<i64: 16, 784>}, {pipeline_mode = #tpu.pipeline_mode<synchronous>, transform_indices = @transform_1, window_bounds = array<i64: 784, 512>}, {pipeline_mode = #tpu.pipeline_mode<synchronous>, transform_indices = @transform_2, window_bounds = array<i64: 1, 512>}, {pipeline_mode = #tpu.pipeline_mode<synchronous>, transform_indices = @transform_3, window_bounds = array<i64: 512, 256>}, {pipeline_mode = #tpu.pipeline_mode<synchronous>, transform_indices = @transform_4, window_bounds = array<i64: 1, 256>}, {pipeline_mode = #tpu.pipeline_mode<synchronous>, transform_indices = @transform_5, window_bounds = array<i64: 1, 256>}, {pipeline_mode = #tpu.pipeline_mode<synchronous>, transform_indices = @transform_6, window_bounds = array<i64: 1, 1>}, {transform_indices = @transform_7, window_bounds = array<i64: 16, 1>}]} {
    %c0 = arith.constant 0 : index
    %c0_0 = arith.constant 0 : index
    %0 = vector.load %arg1[%c0, %c0_0] : memref<16x784xf32, #tpu.memory_space<vmem>>, vector<16x784xf32>
    %1 = arith.truncf %0 : vector<16x784xf32> to vector<16x784xbf16>
    %c0_1 = arith.constant 0 : index
    %c0_2 = arith.constant 0 : index
    %2 = vector.load %arg2[%c0_1, %c0_2] : memref<784x512xbf16, #tpu.memory_space<vmem>>, vector<784x512xbf16>
    %cst = arith.constant dense<0.000000e+00> : vector<16x512xf32>
    %3 = tpu.matmul %1, %2, %cst {dimension_numbers = #tpu.dot_dimension_numbers<[1], [0], [0], [1], [0, 0, 1, 1], [], []>} : vector<16x784xbf16>, vector<784x512xbf16>, vector<16x512xf32> -> vector<16x512xf32>
    %4 = arith.truncf %3 : vector<16x512xf32> to vector<16x512xbf16>
    %c0_3 = arith.constant 0 : index
    %c0_4 = arith.constant 0 : index
    %5 = vector.load %arg3[%c0_3, %c0_4] : memref<1x512xf32, #tpu.memory_space<vmem>>, vector<1x512xf32>
    %6 = arith.truncf %5 : vector<1x512xf32> to vector<1x512xbf16>
    %7 = vector.broadcast %6 : vector<1x512xbf16> to vector<16x512xbf16>
    %8 = arith.addf %4, %7 : vector<16x512xbf16>
    %cst_5 = arith.constant 2.001950e-01 : bf16
    %9 = vector.broadcast %cst_5 : bf16 to vector<16x512xbf16>
    %10 = arith.mulf %8, %9 : vector<16x512xbf16>
    %11 = arith.maximumf %8, %10 : vector<16x512xbf16>
    %c0_6 = arith.constant 0 : index
    %c0_7 = arith.constant 0 : index
    %12 = vector.load %arg4[%c0_6, %c0_7] : memref<512x256xbf16, #tpu.memory_space<vmem>>, vector<512x256xbf16>
    %cst_8 = arith.constant dense<0.000000e+00> : vector<16x256xf32>
    %13 = tpu.matmul %11, %12, %cst_8 {dimension_numbers = #tpu.dot_dimension_numbers<[1], [0], [0], [1], [0, 0, 1, 1], [], []>} : vector<16x512xbf16>, vector<512x256xbf16>, vector<16x256xf32> -> vector<16x256xf32>
    %c0_9 = arith.constant 0 : index
    %c0_10 = arith.constant 0 : index
    %14 = vector.load %arg5[%c0_9, %c0_10] : memref<1x256xf32, #tpu.memory_space<vmem>>, vector<1x256xf32>
    %15 = vector.broadcast %14 : vector<1x256xf32> to vector<16x256xf32>
    %16 = arith.addf %13, %15 : vector<16x256xf32>
    %cst_11 = arith.constant 2.000000e-01 : f32
    %17 = vector.broadcast %cst_11 : f32 to vector<16x256xf32>
    %18 = arith.mulf %16, %17 : vector<16x256xf32>
    %19 = arith.maximumf %16, %18 : vector<16x256xf32>
    %c0_12 = arith.constant 0 : index
    %c0_13 = arith.constant 0 : index
    %20 = vector.load %arg6[%c0_12, %c0_13] : memref<1x256xf32, #tpu.memory_space<vmem>>, vector<1x256xf32>
    %21 = vector.broadcast %20 : vector<1x256xf32> to vector<16x256xf32>
    %22 = arith.mulf %19, %21 : vector<16x256xf32>
    %cst_14 = arith.constant dense<0.000000e+00> : vector<16xf32>
    %23 = vector.multi_reduction <add>, %22, %cst_14 [1] : vector<16x256xf32> to vector<16xf32>
    %24 = vector.shape_cast %23 : vector<16xf32> to vector<16x1xf32>
    %c0_15 = arith.constant 0 : index
    %c0_16 = arith.constant 0 : index
    %25 = vector.load %arg7[%c0_15, %c0_16] : memref<1x1xf32, #tpu.memory_space<vmem>>, vector<1x1xf32>
    %26 = vector.broadcast %25 : vector<1x1xf32> to vector<16x1xf32>
    %27 = arith.addf %24, %26 : vector<16x1xf32>
    %28 = arith.negf %27 : vector<16x1xf32>
    %29 = math.exp %28 : vector<16x1xf32>
    %cst_17 = arith.constant 1.000000e+00 : f32
    %30 = vector.broadcast %cst_17 : f32 to vector<16x1xf32>
    %31 = arith.addf %30, %29 : vector<16x1xf32>
    %32 = arith.divf %30, %31 : vector<16x1xf32>
    %c0_18 = arith.constant 0 : index
    %c0_19 = arith.constant 0 : index
    %33 = vector.load %arg8[%c0_18, %c0_19] : memref<16x1xf32, #tpu.memory_space<vmem>>, vector<16x1xf32>
    tpu.vector_store %arg8[%c0_18, %c0_19], %32 {strides = array<i32>} : memref<16x1xf32, #tpu.memory_space<vmem>>, vector<16x1xf32>,
    return
  }
  func.func @transform_0(%arg0: i32) -> (i32, i32) {
    %c0_i32 = arith.constant 0 : i32
    %c0_i32_0 = arith.constant 0 : i32
    return %arg0, %c0_i32 : i32, i32
  }
  func.func @transform_1(%arg0: i32) -> (i32, i32) {
    %c0_i32 = arith.constant 0 : i32
    %c0_i32_0 = arith.constant 0 : i32
    %c0_i32_1 = arith.constant 0 : i32
    return %c0_i32, %c0_i32_0 : i32, i32
  }
  func.func @transform_2(%arg0: i32) -> (i32, i32) {
    %c0_i32 = arith.constant 0 : i32
    %c0_i32_0 = arith.constant 0 : i32
    %c0_i32_1 = arith.constant 0 : i32
    return %c0_i32, %c0_i32_0 : i32, i32
  }
  func.func @transform_3(%arg0: i32) -> (i32, i32) {
    %c0_i32 = arith.constant 0 : i32
    %c0_i32_0 = arith.constant 0 : i32
    %c0_i32_1 = arith.constant 0 : i32
    return %c0_i32, %c0_i32_0 : i32, i32
  }
  func.func @transform_4(%arg0: i32) -> (i32, i32) {
    %c0_i32 = arith.constant 0 : i32
    %c0_i32_0 = arith.constant 0 : i32
    %c0_i32_1 = arith.constant 0 : i32
    return %c0_i32, %c0_i32_0 : i32, i32
  }
  func.func @transform_5(%arg0: i32) -> (i32, i32) {
    %c0_i32 = arith.constant 0 : i32
    %c0_i32_0 = arith.constant 0 : i32
    %c0_i32_1 = arith.constant 0 : i32
    return %c0_i32, %c0_i32_0 : i32, i32
  }
  func.func @transform_6(%arg0: i32) -> (i32, i32) {
    %c0_i32 = arith.constant 0 : i32
    %c0_i32_0 = arith.constant 0 : i32
    %c0_i32_1 = arith.constant 0 : i32
    return %c0_i32, %c0_i32_0 : i32, i32
  }
  func.func @transform_7(%arg0: i32) -> (i32, i32) {
    %c0_i32 = arith.constant 0 : i32
    %c0_i32_0 = arith.constant 0 : i32
    return %arg0, %c0_i32 : i32, i32
  }
}

</mosaic_0001>

<llo_original>
// kernel: tpu_custom_call.1
$region0: #{tpu_custom_call.1}
  #allocation0 [shape = 'u32[]', space=smem, size = 0x4, offset = 0x4, fixed_abs, tag = 'smem constant byte address 0x4 - core index']
  #allocation1 [shape = 'u32[144,128]{1,0:T(1,128)}', space=vmem, size = 0x12000, scoped, tag = 'internal scratch']
  #allocation2 [shape = 'f32[1,1]{1,0:T(1,128)S(1)}', space=vmem, size = 0x200, scoped, tag = 'scoped memory for tpu_custom_call.1']
  %s0 = inlined_call_operand.hbm [shape: f32[16,784], index: 0, kind: input, shape index: {}]
  %s1 = inlined_call_operand.hbm [shape: bf16[784,512], index: 1, kind: input, shape index: {}]
  %s2 = inlined_call_operand.vmem [shape: f32[1,512], index: 2, kind: input, shape index: {}]
  %s3 = inlined_call_operand.hbm [shape: bf16[512,256], index: 3, kind: input, shape index: {}]
  %s4 = inlined_call_operand.vmem [shape: f32[1,256], index: 4, kind: input, shape index: {}]
  %s5 = inlined_call_operand.vmem [shape: f32[1,256], index: 5, kind: input, shape index: {}]
  %s6 = inlined_call_operand.<no memory space> [shape: f32[1,1], index: 6, kind: input, shape index: {}]
  %s7 = inlined_call_operand.vmem [shape: f32[16,1], index: 7, kind: output, shape index: {}]
  %s8 = sld [smem:[#allocation0]]
  $region50: #{tpu_custom_call.1} parent=0
    _
  %s10 = ssub.s32 1, %s8
  %s11 = scalar_select 0, %s10, %s8
  %v12 = vstv %s6
  %13 = vst [vmem:[#allocation2] sm:$0x1] %v12
  $region1: #{tpu_custom_call.1} parent=0
    #allocation3 [shape = 'u8[57344]{0}', space=vmem, size = 0xe000, scoped, tag = 'input window, operand 0, single buffered']
    #allocation4 [shape = 's32[1]{0}', space=sflag, size = 0x4, scoped, tag = 'scoped memory for tpu_custom_call.1']
    #allocation5 [shape = 'u8[802816]{0}', space=vmem, size = 0xc4000, scoped, tag = 'input window, operand 1, single buffered']
    #allocation6 [shape = 's32[1]{0}', space=sflag, size = 0x4, scoped, tag = 'scoped memory for tpu_custom_call.1']
    #allocation7 [shape = 'u8[262144]{0}', space=vmem, size = 0x40000, scoped, tag = 'input window, operand 3, single buffered']
    %14 = vsyncpa [#allocation4], 0
    %15 = vsyncpa [#allocation6], 0
    // Predicated region
    $region2: #{tpu_custom_call.1} parent=1 // pred_check
      _
    $region3: #{tpu_custom_call.1} parent=1 // pred_check_branch
      %17 = sbr.rel (0) target = $region5
    $region4: #{tpu_custom_call.1} parent=1 // pred_region
      %s19 = ssub.s32 1792, 1792
      %20 = vsyncadd [#allocation4], %s19
      %s21 = sshll.u32 [#allocation3], 4
      %s22 = int_to_ptr.vmem [resolvable:$true] %s21
      %27 = dma.hbm_to_vmem [thread:$0]  %s0, 1792, %s22, [#allocation4], 896, 896, 56
    $region5: #{tpu_custom_call.1} parent=1 // pred_fallthru
      _
    // Predicated region
    $region6: #{tpu_custom_call.1} parent=1 // pred_check
      _
    $region7: #{tpu_custom_call.1} parent=1 // pred_check_branch
      %29 = sbr.rel (0) target = $region9
    $region8: #{tpu_custom_call.1} parent=1 // pred_region
      %s31 = ssub.s32 25088, 25088
      %32 = vsyncadd [#allocation6], %s31
      %s33 = sshll.u32 [#allocation5], 4
      %s34 = int_to_ptr.vmem [resolvable:$true] %s33
      %39 = dma.hbm_to_vmem [thread:$0]  %s1, 25088, %s34, [#allocation6], 256, 256, 16
    $region9: #{tpu_custom_call.1} parent=1 // pred_fallthru
      _
    // Predicated region
    $region10: #{tpu_custom_call.1} parent=1 // pred_check
      _
    $region11: #{tpu_custom_call.1} parent=1 // pred_check_branch
      %41 = sbr.rel (0) target = $region13
    $region12: #{tpu_custom_call.1} parent=1 // pred_region
      _
    $region13: #{tpu_custom_call.1} parent=1 // pred_fallthru
      _
    // Predicated region
    $region14: #{tpu_custom_call.1} parent=1 // pred_check
      _
    $region15: #{tpu_custom_call.1} parent=1 // pred_check_branch
      %43 = sbr.rel (0) target = $region17
    $region16: #{tpu_custom_call.1} parent=1 // pred_region
      %s45 = ssub.s32 8192, 8192
      %46 = vsyncadd [#allocation6], %s45
      %s47 = sshll.u32 [#allocation7], 4
      %s48 = int_to_ptr.vmem [resolvable:$true] %s47
      %53 = dma.hbm_to_vmem [thread:$0]  %s3, 8192, %s48, [#allocation6], 128, 128, 8
    $region17: #{tpu_custom_call.1} parent=1 // pred_fallthru
      _
    // Predicated region
    $region18: #{tpu_custom_call.1} parent=1 // pred_check
      _
    $region19: #{tpu_custom_call.1} parent=1 // pred_check_branch
      %55 = sbr.rel (0) target = $region21
    $region20: #{tpu_custom_call.1} parent=1 // pred_region
      _
    $region21: #{tpu_custom_call.1} parent=1 // pred_fallthru
      _
    // Predicated region
    $region22: #{tpu_custom_call.1} parent=1 // pred_check
      _
    $region23: #{tpu_custom_call.1} parent=1 // pred_check_branch
      %57 = sbr.rel (0) target = $region25
    $region24: #{tpu_custom_call.1} parent=1 // pred_region
      _
    $region25: #{tpu_custom_call.1} parent=1 // pred_fallthru
      _
    // Predicated region
    $region26: #{tpu_custom_call.1} parent=1 // pred_check
      _
    $region27: #{tpu_custom_call.1} parent=1 // pred_check_branch
      %59 = sbr.rel (0) target = $region29
    $region28: #{tpu_custom_call.1} parent=1 // pred_region
      _
    $region29: #{tpu_custom_call.1} parent=1 // pred_fallthru
      _
    // Predicated region
    $region30: #{tpu_custom_call.1} parent=1 // pred_check
      _
    $region31: #{tpu_custom_call.1} parent=1 // pred_check_branch
      %61 = sbr.rel (0) target = $region33
    $region32: #{tpu_custom_call.1} parent=1 // pred_region
      %62 = dma.done [#allocation4], 1792
    $region33: #{tpu_custom_call.1} parent=1 // pred_fallthru
      _
    // Predicated region
    $region34: #{tpu_custom_call.1} parent=1 // pred_check
      _
    $region35: #{tpu_custom_call.1} parent=1 // pred_check_branch
      %64 = sbr.rel (0) target = $region37
    $region36: #{tpu_custom_call.1} parent=1 // pred_region
      %65 = dma.done [#allocation6], 25088
    $region37: #{tpu_custom_call.1} parent=1 // pred_fallthru
      _
    // Predicated region
    $region38: #{tpu_custom_call.1} parent=1 // pred_check
      _
    $region39: #{tpu_custom_call.1} parent=1 // pred_check_branch
      %67 = sbr.rel (0) target = $region41
    $region40: #{tpu_custom_call.1} parent=1 // pred_region
      %68 = dma.done [#allocation6], 8192
    $region41: #{tpu_custom_call.1} parent=1 // pred_fallthru
      _
    %v71 = vld [vmem:[#allocation3] sm:$0xff]
    %v72 = vld [vmem:[#allocation3 + $0x8] sm:$0xff]
    %v73 = vld [vmem:[#allocation3 + $0x10] sm:$0xff]
    %v74 = vld [vmem:[#allocation3 + $0x18] sm:$0xff]
    %v75 = vld [vmem:[#allocation3 + $0x20] sm:$0xff]
    %v76 = vld [vmem:[#allocation3 + $0x28] sm:$0xff]
    %v77 = vld [vmem:[#allocation3 + $0x30] sm:$0xff]
    %v78 = vld [vmem:[#allocation3 + $0x38] sm:$0xff]
    %v79 = vld [vmem:[#allocation3 + $0x40] sm:$0xff]
    %v80 = vld [vmem:[#allocation3 + $0x48] sm:$0xff]
    %v81 = vld [vmem:[#allocation3 + $0x50] sm:$0xff]
    %v82 = vld [vmem:[#allocation3 + $0x58] sm:$0xff]
    %v83 = vld [vmem:[#allocation3 + $0x60] sm:$0xff]
    %v84 = vld [vmem:[#allocation3 + $0x68] sm:$0xff]
    %v85 = vpack.c.bf16 %v78, %v71
    %v86 = vpack.c.bf16 %v79, %v72
    %v87 = vpack.c.bf16 %v80, %v73
    %v88 = vpack.c.bf16 %v81, %v74
    %v89 = vpack.c.bf16 %v82, %v75
    %v90 = vpack.c.bf16 %v83, %v76
    %v91 = vpack.c.bf16 %v84, %v77
    %v92 = vld [vmem:[#allocation5] sm:$0xff]
    %v93 = vld [vmem:[#allocation5 + $0x8] sm:$0xff]
    %v94 = vld [vmem:[#allocation5 + $0x10] sm:$0xff]
    %v95 = vld [vmem:[#allocation5 + $0x18] sm:$0xff]
    %v96 = vld [vmem:[#allocation5 + $0x20] sm:$0xff]
    %v97 = vld [vmem:[#allocation5 + $0x28] sm:$0xff]
    %v98 = vld [vmem:[#allocation5 + $0x30] sm:$0xff]
    %v99 = vld [vmem:[#allocation5 + $0x38] sm:$0xff]
    %v100 = vld [vmem:[#allocation5 + $0x40] sm:$0xff]
    %v101 = vld [vmem:[#allocation5 + $0x48] sm:$0xff]
    %v102 = vld [vmem:[#allocation5 + $0x50] sm:$0xff]
    %v103 = vld [vmem:[#allocation5 + $0x58] sm:$0xff]
    %v104 = vld [vmem:[#allocation5 + $0x60] sm:$0xff]
    %v105 = vld [vmem:[#allocation5 + $0x68] sm:$0xff]
    %v106 = vld [vmem:[#allocation5 + $0x70] sm:$0xff]
    %v107 = vld [vmem:[#allocation5 + $0x78] sm:$0xff]
    %v108 = vld [vmem:[#allocation5 + $0x80] sm:$0xff]
    %v109 = vld [vmem:[#allocation5 + $0x88] sm:$0xff]
    %v110 = vld [vmem:[#allocation5 + $0x90] sm:$0xff]
    %v111 = vld [vmem:[#allocation5 + $0x98] sm:$0xff]
    %v112 = vld [vmem:[#allocation5 + $0xa0] sm:$0xff]
    %v113 = vld [vmem:[#allocation5 + $0xa8] sm:$0xff]
    %v114 = vld [vmem:[#allocation5 + $0xb0] sm:$0xff]
    %v115 = vld [vmem:[#allocation5 + $0xb8] sm:$0xff]
    %v116 = vld [vmem:[#allocation5 + $0xc0] sm:$0xff]
    %v117 = vld [vmem:[#allocation5 + $0xc8] sm:$0xff]
    %v118 = vld [vmem:[#allocation5 + $0xd0] sm:$0xff]
    %v119 = vld [vmem:[#allocation5 + $0xd8] sm:$0xff]
    %v120 = vld [vmem:[#allocation5 + $0xe0] sm:$0xff]
    %v121 = vld [vmem:[#allocation5 + $0xe8] sm:$0xff]
    %v122 = vld [vmem:[#allocation5 + $0xf0] sm:$0xff]
    %v123 = vld [vmem:[#allocation5 + $0xf8] sm:$0xff]
    %v124 = vld [vmem:[#allocation5 + $0x100] sm:$0xff]
    %v125 = vld [vmem:[#allocation5 + $0x108] sm:$0xff]
    %v126 = vld [vmem:[#allocation5 + $0x110] sm:$0xff]
    %v127 = vld [vmem:[#allocation5 + $0x118] sm:$0xff]
    %v128 = vld [vmem:[#allocation5 + $0x120] sm:$0xff]
    %v129 = vld [vmem:[#allocation5 + $0x128] sm:$0xff]
    %v130 = vld [vmem:[#allocation5 + $0x130] sm:$0xff]
    %v131 = vld [vmem:[#allocation5 + $0x138] sm:$0xff]
    %v132 = vld [vmem:[#allocation5 + $0x140] sm:$0xff]
    %v133 = vld [vmem:[#allocation5 + $0x148] sm:$0xff]
    %v134 = vld [vmem:[#allocation5 + $0x150] sm:$0xff]
    %v135 = vld [vmem:[#allocation5 + $0x158] sm:$0xff]
    %v136 = vld [vmem:[#allocation5 + $0x160] sm:$0xff]
    %v137 = vld [vmem:[#allocation5 + $0x168] sm:$0xff]
    %v138 = vld [vmem:[#allocation5 + $0x170] sm:$0xff]
    %v139 = vld [vmem:[#allocation5 + $0x178] sm:$0xff]
    %v140 = vld [vmem:[#allocation5 + $0x180] sm:$0xff]
    %v141 = vld [vmem:[#allocation5 + $0x188] sm:$0xff]
    %v142 = vld [vmem:[#allocation5 + $0x190] sm:$0xff]
    %v143 = vld [vmem:[#allocation5 + $0x198] sm:$0xff]
    %v144 = vld [vmem:[#allocation5 + $0x1a0] sm:$0xff]
    %v145 = vld [vmem:[#allocation5 + $0x1a8] sm:$0xff]
    %v146 = vld [vmem:[#allocation5 + $0x1b0] sm:$0xff]
    %v147 = vld [vmem:[#allocation5 + $0x1b8] sm:$0xff]
    %v148 = vld [vmem:[#allocation5 + $0x1c0] sm:$0xff]
    %v149 = vld [vmem:[#allocation5 + $0x1c8] sm:$0xff]
    %v150 = vld [vmem:[#allocation5 + $0x1d0] sm:$0xff]
    %v151 = vld [vmem:[#allocation5 + $0x1d8] sm:$0xff]
    %v152 = vld [vmem:[#allocation5 + $0x1e0] sm:$0xff]
    %v153 = vld [vmem:[#allocation5 + $0x1e8] sm:$0xff]
    %v154 = vld [vmem:[#allocation5 + $0x1f0] sm:$0xff]
    %v155 = vld [vmem:[#allocation5 + $0x1f8] sm:$0xff]
    %v156 = vld [vmem:[#allocation5 + $0x200] sm:$0xff]
    %v157 = vld [vmem:[#allocation5 + $0x208] sm:$0xff]
    %v158 = vld [vmem:[#allocation5 + $0x210] sm:$0xff]
    %v159 = vld [vmem:[#allocation5 + $0x218] sm:$0xff]
    %v160 = vld [vmem:[#allocation5 + $0x220] sm:$0xff]
    %v161 = vld [vmem:[#allocation5 + $0x228] sm:$0xff]
    %v162 = vld [vmem:[#allocation5 + $0x230] sm:$0xff]
    %v163 = vld [vmem:[#allocation5 + $0x238] sm:$0xff]
    %v164 = vld [vmem:[#allocation5 + $0x240] sm:$0xff]
    %v165 = vld [vmem:[#allocation5 + $0x248] sm:$0xff]
    %v166 = vld [vmem:[#allocation5 + $0x250] sm:$0xff]
    %v167 = vld [vmem:[#allocation5 + $0x258] sm:$0xff]
    %v168 = vld [vmem:[#allocation5 + $0x260] sm:$0xff]
    %v169 = vld [vmem:[#allocation5 + $0x268] sm:$0xff]
    %v170 = vld [vmem:[#allocation5 + $0x270] sm:$0xff]
    %v171 = vld [vmem:[#allocation5 + $0x278] sm:$0xff]
    %v172 = vld [vmem:[#allocation5 + $0x280] sm:$0xff]
    %v173 = vld [vmem:[#allocation5 + $0x288] sm:$0xff]
    %v174 = vld [vmem:[#allocation5 + $0x290] sm:$0xff]
    %v175 = vld [vmem:[#allocation5 + $0x298] sm:$0xff]
    %v176 = vld [vmem:[#allocation5 + $0x2a0] sm:$0xff]
    %v177 = vld [vmem:[#allocation5 + $0x2a8] sm:$0xff]
    %v178 = vld [vmem:[#allocation5 + $0x2b0] sm:$0xff]
    %v179 = vld [vmem:[#allocation5 + $0x2b8] sm:$0xff]
    %v180 = vld [vmem:[#allocation5 + $0x2c0] sm:$0xff]
    %v181 = vld [vmem:[#allocation5 + $0x2c8] sm:$0xff]
    %v182 = vld [vmem:[#allocation5 + $0x2d0] sm:$0xff]
    %v183 = vld [vmem:[#allocation5 + $0x2d8] sm:$0xff]
    %v184 = vld [vmem:[#allocation5 + $0x2e0] sm:$0xff]
    %v185 = vld [vmem:[#allocation5 + $0x2e8] sm:$0xff]
    %v186 = vld [vmem:[#allocation5 + $0x2f0] sm:$0xff]
    %v187 = vld [vmem:[#allocation5 + $0x2f8] sm:$0xff]
    %v188 = vld [vmem:[#allocation5 + $0x300] sm:$0xff]
    %v189 = vld [vmem:[#allocation5 + $0x308] sm:$0xff]
    %v190 = vld [vmem:[#allocation5 + $0x310] sm:$0xff]
    %v191 = vld [vmem:[#allocation5 + $0x318] sm:$0xff]
    %v192 = vld [vmem:[#allocation5 + $0x320] sm:$0xff]
    %v193 = vld [vmem:[#allocation5 + $0x328] sm:$0xff]
    %v194 = vld [vmem:[#allocation5 + $0x330] sm:$0xff]
    %v195 = vld [vmem:[#allocation5 + $0x338] sm:$0xff]
    %v196 = vld [vmem:[#allocation5 + $0x340] sm:$0xff]
    %v197 = vld [vmem:[#allocation5 + $0x348] sm:$0xff]
    %v198 = vld [vmem:[#allocation5 + $0x350] sm:$0xff]
    %v199 = vld [vmem:[#allocation5 + $0x358] sm:$0xff]
    %v200 = vld [vmem:[#allocation5 + $0x360] sm:$0xff]
    %v201 = vld [vmem:[#allocation5 + $0x368] sm:$0xff]
    %v202 = vld [vmem:[#allocation5 + $0x370] sm:$0xff]
    %v203 = vld [vmem:[#allocation5 + $0x378] sm:$0xff]
    %v204 = vld [vmem:[#allocation5 + $0x380] sm:$0xff]
    %v205 = vld [vmem:[#allocation5 + $0x388] sm:$0xff]
    %v206 = vld [vmem:[#allocation5 + $0x390] sm:$0xff]
    %v207 = vld [vmem:[#allocation5 + $0x398] sm:$0xff]
    %v208 = vld [vmem:[#allocation5 + $0x3a0] sm:$0xff]
    %v209 = vld [vmem:[#allocation5 + $0x3a8] sm:$0xff]
    %v210 = vld [vmem:[#allocation5 + $0x3b0] sm:$0xff]
    %v211 = vld [vmem:[#allocation5 + $0x3b8] sm:$0xff]
    %v212 = vld [vmem:[#allocation5 + $0x3c0] sm:$0xff]
    %v213 = vld [vmem:[#allocation5 + $0x3c8] sm:$0xff]
    %v214 = vld [vmem:[#allocation5 + $0x3d0] sm:$0xff]
    %v215 = vld [vmem:[#allocation5 + $0x3d8] sm:$0xff]
    %v216 = vld [vmem:[#allocation5 + $0x3e0] sm:$0xff]
    %v217 = vld [vmem:[#allocation5 + $0x3e8] sm:$0xff]
    %v218 = vld [vmem:[#allocation5 + $0x3f0] sm:$0xff]
    %v219 = vld [vmem:[#allocation5 + $0x3f8] sm:$0xff]
    %v220 = vld [vmem:[#allocation5 + $0x400] sm:$0xff]
    %v221 = vld [vmem:[#allocation5 + $0x408] sm:$0xff]
    %v222 = vld [vmem:[#allocation5 + $0x410] sm:$0xff]
    %v223 = vld [vmem:[#allocation5 + $0x418] sm:$0xff]
    %v224 = vld [vmem:[#allocation5 + $0x420] sm:$0xff]
    %v225 = vld [vmem:[#allocation5 + $0x428] sm:$0xff]
    %v226 = vld [vmem:[#allocation5 + $0x430] sm:$0xff]
    %v227 = vld [vmem:[#allocation5 + $0x438] sm:$0xff]
    %v228 = vld [vmem:[#allocation5 + $0x440] sm:$0xff]
    %v229 = vld [vmem:[#allocation5 + $0x448] sm:$0xff]
    %v230 = vld [vmem:[#allocation5 + $0x450] sm:$0xff]
    %v231 = vld [vmem:[#allocation5 + $0x458] sm:$0xff]
    %v232 = vld [vmem:[#allocation5 + $0x460] sm:$0xff]
    %v233 = vld [vmem:[#allocation5 + $0x468] sm:$0xff]
    %v234 = vld [vmem:[#allocation5 + $0x470] sm:$0xff]
    %v235 = vld [vmem:[#allocation5 + $0x478] sm:$0xff]
    %v236 = vld [vmem:[#allocation5 + $0x480] sm:$0xff]
    %v237 = vld [vmem:[#allocation5 + $0x488] sm:$0xff]
    %v238 = vld [vmem:[#allocation5 + $0x490] sm:$0xff]
    %v239 = vld [vmem:[#allocation5 + $0x498] sm:$0xff]
    %v240 = vld [vmem:[#allocation5 + $0x4a0] sm:$0xff]
    %v241 = vld [vmem:[#allocation5 + $0x4a8] sm:$0xff]
    %v242 = vld [vmem:[#allocation5 + $0x4b0] sm:$0xff]
    %v243 = vld [vmem:[#allocation5 + $0x4b8] sm:$0xff]
    %v244 = vld [vmem:[#allocation5 + $0x4c0] sm:$0xff]
    %v245 = vld [vmem:[#allocation5 + $0x4c8] sm:$0xff]
    %v246 = vld [vmem:[#allocation5 + $0x4d0] sm:$0xff]
    %v247 = vld [vmem:[#allocation5 + $0x4d8] sm:$0xff]
    %v248 = vld [vmem:[#allocation5 + $0x4e0] sm:$0xff]
    %v249 = vld [vmem:[#allocation5 + $0x4e8] sm:$0xff]
    %v250 = vld [vmem:[#allocation5 + $0x4f0] sm:$0xff]
    %v251 = vld [vmem:[#allocation5 + $0x4f8] sm:$0xff]
    %v252 = vld [vmem:[#allocation5 + $0x500] sm:$0xff]
    %v253 = vld [vmem:[#allocation5 + $0x508] sm:$0xff]
    %v254 = vld [vmem:[#allocation5 + $0x510] sm:$0xff]
    %v255 = vld [vmem:[#allocation5 + $0x518] sm:$0xff]
    %v256 = vld [vmem:[#allocation5 + $0x520] sm:$0xff]
    %v257 = vld [vmem:[#allocation5 + $0x528] sm:$0xff]
    %v258 = vld [vmem:[#allocation5 + $0x530] sm:$0xff]
    %v259 = vld [vmem:[#allocation5 + $0x538] sm:$0xff]
    %v260 = vld [vmem:[#allocation5 + $0x540] sm:$0xff]
    %v261 = vld [vmem:[#allocation5 + $0x548] sm:$0xff]
    %v262 = vld [vmem:[#allocation5 + $0x550] sm:$0xff]
    %v263 = vld [vmem:[#allocation5 + $0x558] sm:$0xff]
    %v264 = vld [vmem:[#allocation5 + $0x560] sm:$0xff]
    %v265 = vld [vmem:[#allocation5 + $0x568] sm:$0xff]
    %v266 = vld [vmem:[#allocation5 + $0x570] sm:$0xff]
    %v267 = vld [vmem:[#allocation5 + $0x578] sm:$0xff]
    %v268 = vld [vmem:[#allocation5 + $0x580] sm:$0xff]
    %v269 = vld [vmem:[#allocation5 + $0x588] sm:$0xff]
    %v270 = vld [vmem:[#allocation5 + $0x590] sm:$0xff]
    %v271 = vld [vmem:[#allocation5 + $0x598] sm:$0xff]
    %v272 = vld [vmem:[#allocation5 + $0x5a0] sm:$0xff]
    %v273 = vld [vmem:[#allocation5 + $0x5a8] sm:$0xff]
    %v274 = vld [vmem:[#allocation5 + $0x5b0] sm:$0xff]
    %v275 = vld [vmem:[#allocation5 + $0x5b8] sm:$0xff]
    %v276 = vld [vmem:[#allocation5 + $0x5c0] sm:$0xff]
    %v277 = vld [vmem:[#allocation5 + $0x5c8] sm:$0xff]
    %v278 = vld [vmem:[#allocation5 + $0x5d0] sm:$0xff]
    %v279 = vld [vmem:[#allocation5 + $0x5d8] sm:$0xff]
    %v280 = vld [vmem:[#allocation5 + $0x5e0] sm:$0xff]
    %v281 = vld [vmem:[#allocation5 + $0x5e8] sm:$0xff]
    %v282 = vld [vmem:[#allocation5 + $0x5f0] sm:$0xff]
    %v283 = vld [vmem:[#allocation5 + $0x5f8] sm:$0xff]
    %v284 = vld [vmem:[#allocation5 + $0x600] sm:$0xff]
    %v285 = vld [vmem:[#allocation5 + $0x608] sm:$0xff]
    %v286 = vld [vmem:[#allocation5 + $0x610] sm:$0xff]
    %v287 = vld [vmem:[#allocation5 + $0x618] sm:$0xff]
    %v484 = vunpack.c.l.b16 %v92
    %v485 = vunpack.c.h.b16 %v92
    %v486 = vunpack.c.l.b16 %v93
    %v487 = vunpack.c.h.b16 %v93
    %v488 = vunpack.c.l.b16 %v94
    %v489 = vunpack.c.h.b16 %v94
    %v490 = vunpack.c.l.b16 %v95
    %v491 = vunpack.c.h.b16 %v95
    %v492 = vunpack.c.l.b16 %v96
    %v493 = vunpack.c.h.b16 %v96
    %v494 = vunpack.c.l.b16 %v97
    %v495 = vunpack.c.h.b16 %v97
    %v496 = vunpack.c.l.b16 %v98
    %v497 = vunpack.c.h.b16 %v98
    %v498 = vunpack.c.l.b16 %v99
    %v499 = vunpack.c.h.b16 %v99
    %v500 = vunpack.c.l.b16 %v100
    %v501 = vunpack.c.h.b16 %v100
    %v502 = vunpack.c.l.b16 %v101
    %v503 = vunpack.c.h.b16 %v101
    %v504 = vunpack.c.l.b16 %v102
    %v505 = vunpack.c.h.b16 %v102
    %v506 = vunpack.c.l.b16 %v103
    %v507 = vunpack.c.h.b16 %v103
    %v508 = vunpack.c.l.b16 %v104
    %v509 = vunpack.c.h.b16 %v104
    %v510 = vunpack.c.l.b16 %v105
    %v511 = vunpack.c.h.b16 %v105
    %v512 = vunpack.c.l.b16 %v106
    %v513 = vunpack.c.h.b16 %v106
    %v514 = vunpack.c.l.b16 %v107
    %v515 = vunpack.c.h.b16 %v107
    %v516 = vunpack.c.l.b16 %v108
    %v517 = vunpack.c.h.b16 %v108
    %v518 = vunpack.c.l.b16 %v109
    %v519 = vunpack.c.h.b16 %v109
    %v520 = vunpack.c.l.b16 %v110
    %v521 = vunpack.c.h.b16 %v110
    %v522 = vunpack.c.l.b16 %v111
    %v523 = vunpack.c.h.b16 %v111
    %v524 = vunpack.c.l.b16 %v112
    %v525 = vunpack.c.h.b16 %v112
    %v526 = vunpack.c.l.b16 %v113
    %v527 = vunpack.c.h.b16 %v113
    %v528 = vunpack.c.l.b16 %v114
    %v529 = vunpack.c.h.b16 %v114
    %v530 = vunpack.c.l.b16 %v115
    %v531 = vunpack.c.h.b16 %v115
    %v532 = vunpack.c.l.b16 %v116
    %v533 = vunpack.c.h.b16 %v116
    %v534 = vunpack.c.l.b16 %v117
    %v535 = vunpack.c.h.b16 %v117
    %v536 = vunpack.c.l.b16 %v118
    %v537 = vunpack.c.h.b16 %v118
    %v538 = vunpack.c.l.b16 %v119
    %v539 = vunpack.c.h.b16 %v119
    %v540 = vunpack.c.l.b16 %v120
    %v541 = vunpack.c.h.b16 %v120
    %v542 = vunpack.c.l.b16 %v121
    %v543 = vunpack.c.h.b16 %v121
    %v544 = vunpack.c.l.b16 %v122
    %v545 = vunpack.c.h.b16 %v122
    %v546 = vunpack.c.l.b16 %v123
    %v547 = vunpack.c.h.b16 %v123
    %v548 = vunpack.c.l.b16 %v124
    %v549 = vunpack.c.h.b16 %v124
    %v550 = vunpack.c.l.b16 %v125
    %v551 = vunpack.c.h.b16 %v125
    %v552 = vunpack.c.l.b16 %v126
    %v553 = vunpack.c.h.b16 %v126
    %v554 = vunpack.c.l.b16 %v127
    %v555 = vunpack.c.h.b16 %v127
    %v556 = vunpack.c.l.b16 %v128
    %v557 = vunpack.c.h.b16 %v128
    %v558 = vunpack.c.l.b16 %v129
    %v559 = vunpack.c.h.b16 %v129
    %v560 = vunpack.c.l.b16 %v130
    %v561 = vunpack.c.h.b16 %v130
    %v562 = vunpack.c.l.b16 %v131
    %v563 = vunpack.c.h.b16 %v131
    %v564 = vunpack.c.l.b16 %v132
    %v565 = vunpack.c.h.b16 %v132
    %v566 = vunpack.c.l.b16 %v133
    %v567 = vunpack.c.h.b16 %v133
    %v568 = vunpack.c.l.b16 %v134
    %v569 = vunpack.c.h.b16 %v134
    %v570 = vunpack.c.l.b16 %v135
    %v571 = vunpack.c.h.b16 %v135
    %v572 = vunpack.c.l.b16 %v136
    %v573 = vunpack.c.h.b16 %v136
    %v574 = vunpack.c.l.b16 %v137
    %v575 = vunpack.c.h.b16 %v137
    %v576 = vunpack.c.l.b16 %v138
    %v577 = vunpack.c.h.b16 %v138
    %v578 = vunpack.c.l.b16 %v139
    %v579 = vunpack.c.h.b16 %v139
    %v580 = vunpack.c.l.b16 %v140
    %v581 = vunpack.c.h.b16 %v140
    %v582 = vunpack.c.l.b16 %v141
    %v583 = vunpack.c.h.b16 %v141
    %v584 = vunpack.c.l.b16 %v142
    %v585 = vunpack.c.h.b16 %v142
    %v586 = vunpack.c.l.b16 %v143
    %v587 = vunpack.c.h.b16 %v143
    %v588 = vunpack.c.l.b16 %v144
    %v589 = vunpack.c.h.b16 %v144
    %v590 = vunpack.c.l.b16 %v145
    %v591 = vunpack.c.h.b16 %v145
    %v592 = vunpack.c.l.b16 %v146
    %v593 = vunpack.c.h.b16 %v146
    %v594 = vunpack.c.l.b16 %v147
    %v595 = vunpack.c.h.b16 %v147
    %v596 = vunpack.c.l.b16 %v148
    %v597 = vunpack.c.h.b16 %v148
    %v598 = vunpack.c.l.b16 %v149
    %v599 = vunpack.c.h.b16 %v149
    %v600 = vunpack.c.l.b16 %v150
    %v601 = vunpack.c.h.b16 %v150
    %v602 = vunpack.c.l.b16 %v151
    %v603 = vunpack.c.h.b16 %v151
    %v604 = vunpack.c.l.b16 %v152
    %v605 = vunpack.c.h.b16 %v152
    %v606 = vunpack.c.l.b16 %v153
    %v607 = vunpack.c.h.b16 %v153
    %v608 = vunpack.c.l.b16 %v154
    %v609 = vunpack.c.h.b16 %v154
    %v610 = vunpack.c.l.b16 %v155
    %v611 = vunpack.c.h.b16 %v155
    %v612 = vunpack.c.l.b16 %v156
    %v613 = vunpack.c.h.b16 %v156
    %v614 = vunpack.c.l.b16 %v157
    %v615 = vunpack.c.h.b16 %v157
    %v616 = vunpack.c.l.b16 %v158
    %v617 = vunpack.c.h.b16 %v158
    %v618 = vunpack.c.l.b16 %v159
    %v619 = vunpack.c.h.b16 %v159
    %v620 = vunpack.c.l.b16 %v160
    %v621 = vunpack.c.h.b16 %v160
    %v622 = vunpack.c.l.b16 %v161
    %v623 = vunpack.c.h.b16 %v161
    %v624 = vunpack.c.l.b16 %v162
    %v625 = vunpack.c.h.b16 %v162
    %v626 = vunpack.c.l.b16 %v163
    %v627 = vunpack.c.h.b16 %v163
    %v628 = vunpack.c.l.b16 %v164
    %v629 = vunpack.c.h.b16 %v164
    %v630 = vunpack.c.l.b16 %v165
    %v631 = vunpack.c.h.b16 %v165
    %v632 = vunpack.c.l.b16 %v166
    %v633 = vunpack.c.h.b16 %v166
    %v634 = vunpack.c.l.b16 %v167
    %v635 = vunpack.c.h.b16 %v167
    %v636 = vunpack.c.l.b16 %v168
    %v637 = vunpack.c.h.b16 %v168
    %v638 = vunpack.c.l.b16 %v169
    %v639 = vunpack.c.h.b16 %v169
    %v640 = vunpack.c.l.b16 %v170
    %v641 = vunpack.c.h.b16 %v170
    %v642 = vunpack.c.l.b16 %v171
    %v643 = vunpack.c.h.b16 %v171
    %v644 = vunpack.c.l.b16 %v172
    %v645 = vunpack.c.h.b16 %v172
    %v646 = vunpack.c.l.b16 %v173
    %v647 = vunpack.c.h.b16 %v173
    %v648 = vunpack.c.l.b16 %v174
    %v649 = vunpack.c.h.b16 %v174
    %v650 = vunpack.c.l.b16 %v175
    %v651 = vunpack.c.h.b16 %v175
    %v652 = vunpack.c.l.b16 %v176
    %v653 = vunpack.c.h.b16 %v176
    %v654 = vunpack.c.l.b16 %v177
    %v655 = vunpack.c.h.b16 %v177
    %v656 = vunpack.c.l.b16 %v178
    %v657 = vunpack.c.h.b16 %v178
    %v658 = vunpack.c.l.b16 %v179
    %v659 = vunpack.c.h.b16 %v179
    %v660 = vunpack.c.l.b16 %v180
    %v661 = vunpack.c.h.b16 %v180
    %v662 = vunpack.c.l.b16 %v181
    %v663 = vunpack.c.h.b16 %v181
    %v664 = vunpack.c.l.b16 %v182
    %v665 = vunpack.c.h.b16 %v182
    %v666 = vunpack.c.l.b16 %v183
    %v667 = vunpack.c.h.b16 %v183
    %v668 = vunpack.c.l.b16 %v184
    %v669 = vunpack.c.h.b16 %v184
    %v670 = vunpack.c.l.b16 %v185
    %v671 = vunpack.c.h.b16 %v185
    %v672 = vunpack.c.l.b16 %v186
    %v673 = vunpack.c.h.b16 %v186
    %v674 = vunpack.c.l.b16 %v187
    %v675 = vunpack.c.h.b16 %v187
    %v676 = vunpack.c.l.b16 %v188
    %v677 = vunpack.c.h.b16 %v188
    %v678 = vunpack.c.l.b16 %v189
    %v679 = vunpack.c.h.b16 %v189
    %v680 = vunpack.c.l.b16 %v190
    %v681 = vunpack.c.h.b16 %v190
    %v682 = vunpack.c.l.b16 %v191
    %v683 = vunpack.c.h.b16 %v191
    %v684 = vunpack.c.l.b16 %v192
    %v685 = vunpack.c.h.b16 %v192
    %v686 = vunpack.c.l.b16 %v193
    %v687 = vunpack.c.h.b16 %v193
    %v688 = vunpack.c.l.b16 %v194
    %v689 = vunpack.c.h.b16 %v194
    %v690 = vunpack.c.l.b16 %v195
    %v691 = vunpack.c.h.b16 %v195
    %v692 = vunpack.c.l.b16 %v196
    %v693 = vunpack.c.h.b16 %v196
    %v694 = vunpack.c.l.b16 %v197
    %v695 = vunpack.c.h.b16 %v197
    %v696 = vunpack.c.l.b16 %v198
    %v697 = vunpack.c.h.b16 %v198
    %v698 = vunpack.c.l.b16 %v199
    %v699 = vunpack.c.h.b16 %v199
    %v700 = vunpack.c.l.b16 %v200
    %v701 = vunpack.c.h.b16 %v200
    %v702 = vunpack.c.l.b16 %v201
    %v703 = vunpack.c.h.b16 %v201
    %v704 = vunpack.c.l.b16 %v202
    %v705 = vunpack.c.h.b16 %v202
    %v706 = vunpack.c.l.b16 %v203
    %v707 = vunpack.c.h.b16 %v203
    %v708 = vunpack.c.l.b16 %v204
    %v709 = vunpack.c.h.b16 %v204
    %v710 = vunpack.c.l.b16 %v205
    %v711 = vunpack.c.h.b16 %v205
    %v712 = vunpack.c.l.b16 %v206
    %v713 = vunpack.c.h.b16 %v206
    %v714 = vunpack.c.l.b16 %v207
    %v715 = vunpack.c.h.b16 %v207
    %v716 = vunpack.c.l.b16 %v208
    %v717 = vunpack.c.h.b16 %v208
    %v718 = vunpack.c.l.b16 %v209
    %v719 = vunpack.c.h.b16 %v209
    %v720 = vunpack.c.l.b16 %v210
    %v721 = vunpack.c.h.b16 %v210
    %v722 = vunpack.c.l.b16 %v211
    %v723 = vunpack.c.h.b16 %v211
    %v724 = vunpack.c.l.b16 %v212
    %v725 = vunpack.c.h.b16 %v212
    %v726 = vunpack.c.l.b16 %v213
    %v727 = vunpack.c.h.b16 %v213
    %v728 = vunpack.c.l.b16 %v214
    %v729 = vunpack.c.h.b16 %v214
    %v730 = vunpack.c.l.b16 %v215
    %v731 = vunpack.c.h.b16 %v215
    %v732 = vunpack.c.l.b16 %v216
    %v733 = vunpack.c.h.b16 %v216
    %v734 = vunpack.c.l.b16 %v217
    %v735 = vunpack.c.h.b16 %v217
    %v736 = vunpack.c.l.b16 %v218
    %v737 = vunpack.c.h.b16 %v218
    %v738 = vunpack.c.l.b16 %v219
    %v739 = vunpack.c.h.b16 %v219
    %v740 = vunpack.c.l.b16 %v220
    %v741 = vunpack.c.h.b16 %v220
    %v742 = vunpack.c.l.b16 %v221
    %v743 = vunpack.c.h.b16 %v221
    %v744 = vunpack.c.l.b16 %v222
    %v745 = vunpack.c.h.b16 %v222
    %v746 = vunpack.c.l.b16 %v223
    %v747 = vunpack.c.h.b16 %v223
    %v748 = vunpack.c.l.b16 %v224
    %v749 = vunpack.c.h.b16 %v224
    %v750 = vunpack.c.l.b16 %v225
    %v751 = vunpack.c.h.b16 %v225
    %v752 = vunpack.c.l.b16 %v226
    %v753 = vunpack.c.h.b16 %v226
    %v754 = vunpack.c.l.b16 %v227
    %v755 = vunpack.c.h.b16 %v227
    %v756 = vunpack.c.l.b16 %v228
    %v757 = vunpack.c.h.b16 %v228
    %v758 = vunpack.c.l.b16 %v229
    %v759 = vunpack.c.h.b16 %v229
    %v760 = vunpack.c.l.b16 %v230
    %v761 = vunpack.c.h.b16 %v230
    %v762 = vunpack.c.l.b16 %v231
    %v763 = vunpack.c.h.b16 %v231
    %v764 = vunpack.c.l.b16 %v232
    %v765 = vunpack.c.h.b16 %v232
    %v766 = vunpack.c.l.b16 %v233
    %v767 = vunpack.c.h.b16 %v233
    %v768 = vunpack.c.l.b16 %v234
    %v769 = vunpack.c.h.b16 %v234
    %v770 = vunpack.c.l.b16 %v235
    %v771 = vunpack.c.h.b16 %v235
    %v772 = vunpack.c.l.b16 %v236
    %v773 = vunpack.c.h.b16 %v236
    %v774 = vunpack.c.l.b16 %v237
    %v775 = vunpack.c.h.b16 %v237
    %v776 = vunpack.c.l.b16 %v238
    %v777 = vunpack.c.h.b16 %v238
    %v778 = vunpack.c.l.b16 %v239
    %v779 = vunpack.c.h.b16 %v239
    %v780 = vunpack.c.l.b16 %v240
    %v781 = vunpack.c.h.b16 %v240
    %v782 = vunpack.c.l.b16 %v241
    %v783 = vunpack.c.h.b16 %v241
    %v784 = vunpack.c.l.b16 %v242
    %v785 = vunpack.c.h.b16 %v242
    %v786 = vunpack.c.l.b16 %v243
    %v787 = vunpack.c.h.b16 %v243
    %v788 = vunpack.c.l.b16 %v244
    %v789 = vunpack.c.h.b16 %v244
    %v790 = vunpack.c.l.b16 %v245
    %v791 = vunpack.c.h.b16 %v245
    %v792 = vunpack.c.l.b16 %v246
    %v793 = vunpack.c.h.b16 %v246
    %v794 = vunpack.c.l.b16 %v247
    %v795 = vunpack.c.h.b16 %v247
    %v796 = vunpack.c.l.b16 %v248
    %v797 = vunpack.c.h.b16 %v248
    %v798 = vunpack.c.l.b16 %v249
    %v799 = vunpack.c.h.b16 %v249
    %v800 = vunpack.c.l.b16 %v250
    %v801 = vunpack.c.h.b16 %v250
    %v802 = vunpack.c.l.b16 %v251
    %v803 = vunpack.c.h.b16 %v251
    %v804 = vunpack.c.l.b16 %v252
    %v805 = vunpack.c.h.b16 %v252
    %v806 = vunpack.c.l.b16 %v253
    %v807 = vunpack.c.h.b16 %v253
    %v808 = vunpack.c.l.b16 %v254
    %v809 = vunpack.c.h.b16 %v254
    %v810 = vunpack.c.l.b16 %v255
    %v811 = vunpack.c.h.b16 %v255
    %v812 = vunpack.c.l.b16 %v256
    %v813 = vunpack.c.h.b16 %v256
    %v814 = vunpack.c.l.b16 %v257
    %v815 = vunpack.c.h.b16 %v257
    %v816 = vunpack.c.l.b16 %v258
    %v817 = vunpack.c.h.b16 %v258
    %v818 = vunpack.c.l.b16 %v259
    %v819 = vunpack.c.h.b16 %v259
    %v820 = vunpack.c.l.b16 %v260
    %v821 = vunpack.c.h.b16 %v260
    %v822 = vunpack.c.l.b16 %v261
    %v823 = vunpack.c.h.b16 %v261
    %v824 = vunpack.c.l.b16 %v262
    %v825 = vunpack.c.h.b16 %v262
    %v826 = vunpack.c.l.b16 %v263
    %v827 = vunpack.c.h.b16 %v263
    %v828 = vunpack.c.l.b16 %v264
    %v829 = vunpack.c.h.b16 %v264
    %v830 = vunpack.c.l.b16 %v265
    %v831 = vunpack.c.h.b16 %v265
    %v832 = vunpack.c.l.b16 %v266
    %v833 = vunpack.c.h.b16 %v266
    %v834 = vunpack.c.l.b16 %v267
    %v835 = vunpack.c.h.b16 %v267
    %v836 = vunpack.c.l.b16 %v268
    %v837 = vunpack.c.h.b16 %v268
    %v838 = vunpack.c.l.b16 %v269
    %v839 = vunpack.c.h.b16 %v269
    %v840 = vunpack.c.l.b16 %v270
    %v841 = vunpack.c.h.b16 %v270
    %v842 = vunpack.c.l.b16 %v271
    %v843 = vunpack.c.h.b16 %v271
    %v844 = vunpack.c.l.b16 %v272
    %v845 = vunpack.c.h.b16 %v272
    %v846 = vunpack.c.l.b16 %v273
    %v847 = vunpack.c.h.b16 %v273
    %v848 = vunpack.c.l.b16 %v274
    %v849 = vunpack.c.h.b16 %v274
    %v850 = vunpack.c.l.b16 %v275
    %v851 = vunpack.c.h.b16 %v275
    %v852 = vunpack.c.l.b16 %v276
    %v853 = vunpack.c.h.b16 %v276
    %v854 = vunpack.c.l.b16 %v277
    %v855 = vunpack.c.h.b16 %v277
    %v856 = vunpack.c.l.b16 %v278
    %v857 = vunpack.c.h.b16 %v278
    %v858 = vunpack.c.l.b16 %v279
    %v859 = vunpack.c.h.b16 %v279
    %v860 = vunpack.c.l.b16 %v280
    %v861 = vunpack.c.h.b16 %v280
    %v862 = vunpack.c.l.b16 %v281
    %v863 = vunpack.c.h.b16 %v281
    %v864 = vunpack.c.l.b16 %v282
    %v865 = vunpack.c.h.b16 %v282
    %v866 = vunpack.c.l.b16 %v283
    %v867 = vunpack.c.h.b16 %v283
    %v868 = vunpack.c.l.b16 %v284
    %v869 = vunpack.c.h.b16 %v284
    %v870 = vunpack.c.l.b16 %v285
    %v871 = vunpack.c.h.b16 %v285
    %v872 = vunpack.c.l.b16 %v286
    %v873 = vunpack.c.h.b16 %v286
    %v874 = vunpack.c.l.b16 %v287
    %v875 = vunpack.c.h.b16 %v287
    %v876 = vpack.c.b16 %v488, %v484
    %v877 = vpack.c.b16 %v489, %v485
    %v878 = vpack.c.b16 %v490, %v486
    %v879 = vpack.c.b16 %v491, %v487
    %v880 = vpack.c.b16 %v496, %v492
    %v881 = vpack.c.b16 %v497, %v493
    %v882 = vpack.c.b16 %v498, %v494
    %v883 = vpack.c.b16 %v499, %v495
    %v884 = vpack.c.b16 %v504, %v500
    %v885 = vpack.c.b16 %v505, %v501
    %v886 = vpack.c.b16 %v506, %v502
    %v887 = vpack.c.b16 %v507, %v503
    %v888 = vpack.c.b16 %v512, %v508
    %v889 = vpack.c.b16 %v513, %v509
    %v890 = vpack.c.b16 %v514, %v510
    %v891 = vpack.c.b16 %v515, %v511
    %v892 = vpack.c.b16 %v520, %v516
    %v893 = vpack.c.b16 %v521, %v517
    %v894 = vpack.c.b16 %v522, %v518
    %v895 = vpack.c.b16 %v523, %v519
    %v896 = vpack.c.b16 %v528, %v524
    %v897 = vpack.c.b16 %v529, %v525
    %v898 = vpack.c.b16 %v530, %v526
    %v899 = vpack.c.b16 %v531, %v527
    %v900 = vpack.c.b16 %v536, %v532
    %v901 = vpack.c.b16 %v537, %v533
    %v902 = vpack.c.b16 %v538, %v534
    %v903 = vpack.c.b16 %v539, %v535
    %v904 = vpack.c.b16 %v544, %v540
    %v905 = vpack.c.b16 %v545, %v541
    %v906 = vpack.c.b16 %v546, %v542
    %v907 = vpack.c.b16 %v547, %v543
    %v908 = vpack.c.b16 %v552, %v548
    %v909 = vpack.c.b16 %v553, %v549
    %v910 = vpack.c.b16 %v554, %v550
    %v911 = vpack.c.b16 %v555, %v551
    %v912 = vpack.c.b16 %v560, %v556
    %v913 = vpack.c.b16 %v561, %v557
    %v914 = vpack.c.b16 %v562, %v558
    %v915 = vpack.c.b16 %v563, %v559
    %v916 = vpack.c.b16 %v568, %v564
    %v917 = vpack.c.b16 %v569, %v565
    %v918 = vpack.c.b16 %v570, %v566
    %v919 = vpack.c.b16 %v571, %v567
    %v920 = vpack.c.b16 %v576, %v572
    %v921 = vpack.c.b16 %v577, %v573
    %v922 = vpack.c.b16 %v578, %v574
    %v923 = vpack.c.b16 %v579, %v575
    %v924 = vpack.c.b16 %v584, %v580
    %v925 = vpack.c.b16 %v585, %v581
    %v926 = vpack.c.b16 %v586, %v582
    %v927 = vpack.c.b16 %v587, %v583
    %v928 = vpack.c.b16 %v592, %v588
    %v929 = vpack.c.b16 %v593, %v589
    %v930 = vpack.c.b16 %v594, %v590
    %v931 = vpack.c.b16 %v595, %v591
    %v932 = vpack.c.b16 %v600, %v596
    %v933 = vpack.c.b16 %v601, %v597
    %v934 = vpack.c.b16 %v602, %v598
    %v935 = vpack.c.b16 %v603, %v599
    %v936 = vpack.c.b16 %v608, %v604
    %v937 = vpack.c.b16 %v609, %v605
    %v938 = vpack.c.b16 %v610, %v606
    %v939 = vpack.c.b16 %v611, %v607
    %v940 = vpack.c.b16 %v616, %v612
    %v941 = vpack.c.b16 %v617, %v613
    %v942 = vpack.c.b16 %v618, %v614
    %v943 = vpack.c.b16 %v619, %v615
    %v944 = vpack.c.b16 %v624, %v620
    %v945 = vpack.c.b16 %v625, %v621
    %v946 = vpack.c.b16 %v626, %v622
    %v947 = vpack.c.b16 %v627, %v623
    %v948 = vpack.c.b16 %v632, %v628
    %v949 = vpack.c.b16 %v633, %v629
    %v950 = vpack.c.b16 %v634, %v630
    %v951 = vpack.c.b16 %v635, %v631
    %v952 = vpack.c.b16 %v640, %v636
    %v953 = vpack.c.b16 %v641, %v637
    %v954 = vpack.c.b16 %v642, %v638
    %v955 = vpack.c.b16 %v643, %v639
    %v956 = vpack.c.b16 %v648, %v644
    %v957 = vpack.c.b16 %v649, %v645
    %v958 = vpack.c.b16 %v650, %v646
    %v959 = vpack.c.b16 %v651, %v647
    %v960 = vpack.c.b16 %v656, %v652
    %v961 = vpack.c.b16 %v657, %v653
    %v962 = vpack.c.b16 %v658, %v654
    %v963 = vpack.c.b16 %v659, %v655
    %v964 = vpack.c.b16 %v664, %v660
    %v965 = vpack.c.b16 %v665, %v661
    %v966 = vpack.c.b16 %v666, %v662
    %v967 = vpack.c.b16 %v667, %v663
    %v968 = vpack.c.b16 %v672, %v668
    %v969 = vpack.c.b16 %v673, %v669
    %v970 = vpack.c.b16 %v674, %v670
    %v971 = vpack.c.b16 %v675, %v671
    %v972 = vpack.c.b16 %v680, %v676
    %v973 = vpack.c.b16 %v681, %v677
    %v974 = vpack.c.b16 %v682, %v678
    %v975 = vpack.c.b16 %v683, %v679
    %v976 = vpack.c.b16 %v688, %v684
    %v977 = vpack.c.b16 %v689, %v685
    %v978 = vpack.c.b16 %v690, %v686
    %v979 = vpack.c.b16 %v691, %v687
    %v980 = vpack.c.b16 %v696, %v692
    %v981 = vpack.c.b16 %v697, %v693
    %v982 = vpack.c.b16 %v698, %v694
    %v983 = vpack.c.b16 %v699, %v695
    %v984 = vpack.c.b16 %v704, %v700
    %v985 = vpack.c.b16 %v705, %v701
    %v986 = vpack.c.b16 %v706, %v702
    %v987 = vpack.c.b16 %v707, %v703
    %v988 = vpack.c.b16 %v712, %v708
    %v989 = vpack.c.b16 %v713, %v709
    %v990 = vpack.c.b16 %v714, %v710
    %v991 = vpack.c.b16 %v715, %v711
    %v992 = vpack.c.b16 %v720, %v716
    %v993 = vpack.c.b16 %v721, %v717
    %v994 = vpack.c.b16 %v722, %v718
    %v995 = vpack.c.b16 %v723, %v719
    %v996 = vpack.c.b16 %v728, %v724
    %v997 = vpack.c.b16 %v729, %v725
    %v998 = vpack.c.b16 %v730, %v726
    %v999 = vpack.c.b16 %v731, %v727
    %v1000 = vpack.c.b16 %v736, %v732
    %v1001 = vpack.c.b16 %v737, %v733
    %v1002 = vpack.c.b16 %v738, %v734
    %v1003 = vpack.c.b16 %v739, %v735
    %v1004 = vpack.c.b16 %v744, %v740
    %v1005 = vpack.c.b16 %v745, %v741
    %v1006 = vpack.c.b16 %v746, %v742
    %v1007 = vpack.c.b16 %v747, %v743
    %v1008 = vpack.c.b16 %v752, %v748
    %v1009 = vpack.c.b16 %v753, %v749
    %v1010 = vpack.c.b16 %v754, %v750
    %v1011 = vpack.c.b16 %v755, %v751
    %v1012 = vpack.c.b16 %v760, %v756
    %v1013 = vpack.c.b16 %v761, %v757
    %v1014 = vpack.c.b16 %v762, %v758
    %v1015 = vpack.c.b16 %v763, %v759
    %v1016 = vpack.c.b16 %v768, %v764
    %v1017 = vpack.c.b16 %v769, %v765
    %v1018 = vpack.c.b16 %v770, %v766
    %v1019 = vpack.c.b16 %v771, %v767
    %v1020 = vpack.c.b16 %v776, %v772
    %v1021 = vpack.c.b16 %v777, %v773
    %v1022 = vpack.c.b16 %v778, %v774
    %v1023 = vpack.c.b16 %v779, %v775
    %v1024 = vpack.c.b16 %v784, %v780
    %v1025 = vpack.c.b16 %v785, %v781
    %v1026 = vpack.c.b16 %v786, %v782
    %v1027 = vpack.c.b16 %v787, %v783
    %v1028 = vpack.c.b16 %v792, %v788
    %v1029 = vpack.c.b16 %v793, %v789
    %v1030 = vpack.c.b16 %v794, %v790
    %v1031 = vpack.c.b16 %v795, %v791
    %v1032 = vpack.c.b16 %v800, %v796
    %v1033 = vpack.c.b16 %v801, %v797
    %v1034 = vpack.c.b16 %v802, %v798
    %v1035 = vpack.c.b16 %v803, %v799
    %v1036 = vpack.c.b16 %v808, %v804
    %v1037 = vpack.c.b16 %v809, %v805
    %v1038 = vpack.c.b16 %v810, %v806
    %v1039 = vpack.c.b16 %v811, %v807
    %v1040 = vpack.c.b16 %v816, %v812
    %v1041 = vpack.c.b16 %v817, %v813
    %v1042 = vpack.c.b16 %v818, %v814
    %v1043 = vpack.c.b16 %v819, %v815
    %v1044 = vpack.c.b16 %v824, %v820
    %v1045 = vpack.c.b16 %v825, %v821
    %v1046 = vpack.c.b16 %v826, %v822
    %v1047 = vpack.c.b16 %v827, %v823
    %v1048 = vpack.c.b16 %v832, %v828
    %v1049 = vpack.c.b16 %v833, %v829
    %v1050 = vpack.c.b16 %v834, %v830
    %v1051 = vpack.c.b16 %v835, %v831
    %v1052 = vpack.c.b16 %v840, %v836
    %v1053 = vpack.c.b16 %v841, %v837
    %v1054 = vpack.c.b16 %v842, %v838
    %v1055 = vpack.c.b16 %v843, %v839
    %v1056 = vpack.c.b16 %v848, %v844
    %v1057 = vpack.c.b16 %v849, %v845
    %v1058 = vpack.c.b16 %v850, %v846
    %v1059 = vpack.c.b16 %v851, %v847
    %v1060 = vpack.c.b16 %v856, %v852
    %v1061 = vpack.c.b16 %v857, %v853
    %v1062 = vpack.c.b16 %v858, %v854
    %v1063 = vpack.c.b16 %v859, %v855
    %v1064 = vpack.c.b16 %v864, %v860
    %v1065 = vpack.c.b16 %v865, %v861
    %v1066 = vpack.c.b16 %v866, %v862
    %v1067 = vpack.c.b16 %v867, %v863
    %v1068 = vpack.c.b16 %v872, %v868
    %v1069 = vpack.c.b16 %v873, %v869
    %v1070 = vpack.c.b16 %v874, %v870
    %v1071 = vpack.c.b16 %v875, %v871
    %vm1268 = vcmask 130048
    %v1270 = vsel %vm1268, %v91, 0
    %1272 = vmatprep.subr.bf16.mxu0 %v877
    %1273 = vmatpush1.bf16.msra.mxu0 %v876
    %1274 = vmatprep.subr.bf16.mxu0 %v881
    %1275 = vmatpush1.bf16.msra.mxu0 %v880
    %1276 = vmatprep.subr.bf16.mxu0 %v885
    %1277 = vmatpush1.bf16.msra.mxu0 %v884
    %1278 = vmatprep.subr.bf16.mxu0 %v889
    %1279 = vmatpush1.bf16.msra.mxu0 %v888
    %1280 = vmatprep.subr.bf16.mxu0 %v893
    %1281 = vmatpush1.bf16.msra.mxu0 %v892
    %1282 = vmatprep.subr.bf16.mxu0 %v897
    %1283 = vmatpush1.bf16.msra.mxu0 %v896
    %1284 = vmatprep.subr.bf16.mxu0 %v901
    %1285 = vmatpush1.bf16.msra.mxu0 %v900
    %1286 = vmatprep.subr.bf16.mxu0 %v905
    %1287 = vmatpush1.bf16.msra.mxu0 %v904
    %1288 = vmatprep.subr.bf16.mxu0 %v909
    %1289 = vmatpush1.bf16.msra.mxu0 %v908
    %1290 = vmatprep.subr.bf16.mxu0 %v913
    %1291 = vmatpush1.bf16.msra.mxu0 %v912
    %1292 = vmatprep.subr.bf16.mxu0 %v917
    %1293 = vmatpush1.bf16.msra.mxu0 %v916
    %1294 = vmatprep.subr.bf16.mxu0 %v921
    %1295 = vmatpush1.bf16.msra.mxu0 %v920
    %1296 = vmatprep.subr.bf16.mxu0 %v925
    %1297 = vmatpush1.bf16.msra.mxu0 %v924
    %1298 = vmatprep.subr.bf16.mxu0 %v929
    %1299 = vmatpush1.bf16.msra.mxu0 %v928
    %1300 = vmatprep.subr.bf16.mxu0 %v933
    %1301 = vmatpush1.bf16.msra.mxu0 %v932
    %1302 = vmatprep.subr.bf16.mxu0 %v937
    %1303 = vmatpush1.bf16.msra.mxu0 %v936
    %1304 = vmatprep.mubr.bf16.mxu0 %v86
    %1305 = vmatmul.mubr.bf16.gmra.mrb[0].mxu0 %v85
    %v1306 = vpop.f32.mrb[0].mxu0
    %v1307 = vadd.f32 0.0, %v1306
    %v1308 = vpop.f32.mrb[0].mxu0
    %v1309 = vadd.f32 0.0, %v1308
    %v1310 = vpop.f32.mrb[0].mxu0
    %v1311 = vadd.f32 0.0, %v1310
    %v1312 = vpop.f32.mrb[0].mxu0
    %v1313 = vadd.f32 0.0, %v1312
    %1314 = vdwg.mxu0
    %1315 = vmatprep.subr.bf16.mxu0 %v941
    %1316 = vmatpush1.bf16.msra.mxu0 %v940
    %1317 = vmatprep.subr.bf16.mxu0 %v945
    %1318 = vmatpush1.bf16.msra.mxu0 %v944
    %1319 = vmatprep.subr.bf16.mxu0 %v949
    %1320 = vmatpush1.bf16.msra.mxu0 %v948
    %1321 = vmatprep.subr.bf16.mxu0 %v953
    %1322 = vmatpush1.bf16.msra.mxu0 %v952
    %1323 = vmatprep.subr.bf16.mxu0 %v957
    %1324 = vmatpush1.bf16.msra.mxu0 %v956
    %1325 = vmatprep.subr.bf16.mxu0 %v961
    %1326 = vmatpush1.bf16.msra.mxu0 %v960
    %1327 = vmatprep.subr.bf16.mxu0 %v965
    %1328 = vmatpush1.bf16.msra.mxu0 %v964
    %1329 = vmatprep.subr.bf16.mxu0 %v969
    %1330 = vmatpush1.bf16.msra.mxu0 %v968
    %1331 = vmatprep.subr.bf16.mxu0 %v973
    %1332 = vmatpush1.bf16.msra.mxu0 %v972
    %1333 = vmatprep.subr.bf16.mxu0 %v977
    %1334 = vmatpush1.bf16.msra.mxu0 %v976
    %1335 = vmatprep.subr.bf16.mxu0 %v981
    %1336 = vmatpush1.bf16.msra.mxu0 %v980
    %1337 = vmatprep.subr.bf16.mxu0 %v985
    %1338 = vmatpush1.bf16.msra.mxu0 %v984
    %1339 = vmatprep.subr.bf16.mxu0 %v989
    %1340 = vmatpush1.bf16.msra.mxu0 %v988
    %1341 = vmatprep.subr.bf16.mxu0 %v993
    %1342 = vmatpush1.bf16.msra.mxu0 %v992
    %1343 = vmatprep.subr.bf16.mxu0 %v997
    %1344 = vmatpush1.bf16.msra.mxu0 %v996
    %1345 = vmatprep.subr.bf16.mxu0 %v1001
    %1346 = vmatpush1.bf16.msra.mxu0 %v1000
    %1347 = vmatprep.mubr.bf16.mxu0 %v88
    %1348 = vmatmul.mubr.bf16.gmra.mrb[0].mxu0 %v87
    %v1349 = vpop.f32.mrb[0].mxu0
    %v1350 = vadd.f32 %v1307, %v1349
    %v1351 = vpop.f32.mrb[0].mxu0
    %v1352 = vadd.f32 %v1309, %v1351
    %v1353 = vpop.f32.mrb[0].mxu0
    %v1354 = vadd.f32 %v1311, %v1353
    %v1355 = vpop.f32.mrb[0].mxu0
    %v1356 = vadd.f32 %v1313, %v1355
    %1357 = vdwg.mxu0
    %1358 = vmatprep.subr.bf16.mxu0 %v1005
    %1359 = vmatpush1.bf16.msra.mxu0 %v1004
    %1360 = vmatprep.subr.bf16.mxu0 %v1009
    %1361 = vmatpush1.bf16.msra.mxu0 %v1008
    %1362 = vmatprep.subr.bf16.mxu0 %v1013
    %1363 = vmatpush1.bf16.msra.mxu0 %v1012
    %1364 = vmatprep.subr.bf16.mxu0 %v1017
    %1365 = vmatpush1.bf16.msra.mxu0 %v1016
    %1366 = vmatprep.subr.bf16.mxu0 %v1021
    %1367 = vmatpush1.bf16.msra.mxu0 %v1020
    %1368 = vmatprep.subr.bf16.mxu0 %v1025
    %1369 = vmatpush1.bf16.msra.mxu0 %v1024
    %1370 = vmatprep.subr.bf16.mxu0 %v1029
    %1371 = vmatpush1.bf16.msra.mxu0 %v1028
    %1372 = vmatprep.subr.bf16.mxu0 %v1033
    %1373 = vmatpush1.bf16.msra.mxu0 %v1032
    %1374 = vmatprep.subr.bf16.mxu0 %v1037
    %1375 = vmatpush1.bf16.msra.mxu0 %v1036
    %1376 = vmatprep.subr.bf16.mxu0 %v1041
    %1377 = vmatpush1.bf16.msra.mxu0 %v1040
    %1378 = vmatprep.subr.bf16.mxu0 %v1045
    %1379 = vmatpush1.bf16.msra.mxu0 %v1044
    %1380 = vmatprep.subr.bf16.mxu0 %v1049
    %1381 = vmatpush1.bf16.msra.mxu0 %v1048
    %1382 = vmatprep.subr.bf16.mxu0 %v1053
    %1383 = vmatpush1.bf16.msra.mxu0 %v1052
    %1384 = vmatprep.subr.bf16.mxu0 %v1057
    %1385 = vmatpush1.bf16.msra.mxu0 %v1056
    %1386 = vmatprep.subr.bf16.mxu0 %v1061
    %1387 = vmatpush1.bf16.msra.mxu0 %v1060
    %1388 = vmatprep.subr.bf16.mxu0 %v1065
    %1389 = vmatpush1.bf16.msra.mxu0 %v1064
    %1390 = vmatprep.mubr.bf16.mxu0 %v90
    %1391 = vmatmul.mubr.bf16.gmra.mrb[0].mxu0 %v89
    %v1392 = vpop.f32.mrb[0].mxu0
    %v1393 = vadd.f32 %v1350, %v1392
    %v1394 = vpop.f32.mrb[0].mxu0
    %v1395 = vadd.f32 %v1352, %v1394
    %v1396 = vpop.f32.mrb[0].mxu0
    %v1397 = vadd.f32 %v1354, %v1396
    %v1398 = vpop.f32.mrb[0].mxu0
    %v1399 = vadd.f32 %v1356, %v1398
    %1400 = vdwg.mxu0
    %1401 = vmatprep.subr.bf16.mxu0 %v1069
    %1402 = vmatpush1.bf16.msra.mxu0 %v1068
    %1403 = vmatprep.subr.bf16.mxu0 0
    %1404 = vmatpush1.bf16.msra.mxu0 0
    %1405 = vmatprep.subr.bf16.mxu0 0
    %1406 = vmatpush1.bf16.msra.mxu0 0
    %1407 = vmatprep.subr.bf16.mxu0 0
    %1408 = vmatpush1.bf16.msra.mxu0 0
    %1409 = vmatprep.subr.bf16.mxu0 0
    %1410 = vmatpush1.bf16.msra.mxu0 0
    %1411 = vmatprep.subr.bf16.mxu0 0
    %1412 = vmatpush1.bf16.msra.mxu0 0
    %1413 = vmatprep.subr.bf16.mxu0 0
    %1414 = vmatpush1.bf16.msra.mxu0 0
    %1415 = vmatprep.subr.bf16.mxu0 0
    %1416 = vmatpush1.bf16.msra.mxu0 0
    %1417 = vmatprep.subr.bf16.mxu0 0
    %1418 = vmatpush1.bf16.msra.mxu0 0
    %1419 = vmatprep.subr.bf16.mxu0 0
    %1420 = vmatpush1.bf16.msra.mxu0 0
    %1421 = vmatprep.subr.bf16.mxu0 0
    %1422 = vmatpush1.bf16.msra.mxu0 0
    %1423 = vmatprep.subr.bf16.mxu0 0
    %1424 = vmatpush1.bf16.msra.mxu0 0
    %1425 = vmatprep.subr.bf16.mxu0 0
    %1426 = vmatpush1.bf16.msra.mxu0 0
    %1427 = vmatprep.subr.bf16.mxu0 0
    %1428 = vmatpush1.bf16.msra.mxu0 0
    %1429 = vmatprep.subr.bf16.mxu0 0
    %1430 = vmatpush1.bf16.msra.mxu0 0
    %1431 = vmatprep.subr.bf16.mxu0 0
    %1432 = vmatpush1.bf16.msra.mxu0 0
    %1433 = vmatprep.mubr.bf16.mxu0 0
    %1434 = vmatmul.mubr.bf16.gmra.mrb[0].mxu0 %v1270
    %v1435 = vpop.f32.mrb[0].mxu0
    %v1436 = vadd.f32 %v1393, %v1435
    %v1437 = vpop.f32.mrb[0].mxu0
    %v1438 = vadd.f32 %v1395, %v1437
    %v1439 = vpop.f32.mrb[0].mxu0
    %v1440 = vadd.f32 %v1397, %v1439
    %v1441 = vpop.f32.mrb[0].mxu0
    %v1442 = vadd.f32 %v1399, %v1441
    %1443 = vdwg.mxu0
    %1444 = vmatprep.subr.bf16.mxu0 %v879
    %1445 = vmatpush1.bf16.msra.mxu0 %v878
    %1446 = vmatprep.subr.bf16.mxu0 %v883
    %1447 = vmatpush1.bf16.msra.mxu0 %v882
    %1448 = vmatprep.subr.bf16.mxu0 %v887
    %1449 = vmatpush1.bf16.msra.mxu0 %v886
    %1450 = vmatprep.subr.bf16.mxu0 %v891
    %1451 = vmatpush1.bf16.msra.mxu0 %v890
    %1452 = vmatprep.subr.bf16.mxu0 %v895
    %1453 = vmatpush1.bf16.msra.mxu0 %v894
    %1454 = vmatprep.subr.bf16.mxu0 %v899
    %1455 = vmatpush1.bf16.msra.mxu0 %v898
    %1456 = vmatprep.subr.bf16.mxu0 %v903
    %1457 = vmatpush1.bf16.msra.mxu0 %v902
    %1458 = vmatprep.subr.bf16.mxu0 %v907
    %1459 = vmatpush1.bf16.msra.mxu0 %v906
    %1460 = vmatprep.subr.bf16.mxu0 %v911
    %1461 = vmatpush1.bf16.msra.mxu0 %v910
    %1462 = vmatprep.subr.bf16.mxu0 %v915
    %1463 = vmatpush1.bf16.msra.mxu0 %v914
    %1464 = vmatprep.subr.bf16.mxu0 %v919
    %1465 = vmatpush1.bf16.msra.mxu0 %v918
    %1466 = vmatprep.subr.bf16.mxu0 %v923
    %1467 = vmatpush1.bf16.msra.mxu0 %v922
    %1468 = vmatprep.subr.bf16.mxu0 %v927
    %1469 = vmatpush1.bf16.msra.mxu0 %v926
    %1470 = vmatprep.subr.bf16.mxu0 %v931
    %1471 = vmatpush1.bf16.msra.mxu0 %v930
    %1472 = vmatprep.subr.bf16.mxu0 %v935
    %1473 = vmatpush1.bf16.msra.mxu0 %v934
    %1474 = vmatprep.subr.bf16.mxu0 %v939
    %1475 = vmatpush1.bf16.msra.mxu0 %v938
    %1476 = vmatprep.mubr.bf16.mxu0 %v86
    %1477 = vmatmul.mubr.bf16.gmra.mrb[0].mxu0 %v85
    %v1478 = vpop.f32.mrb[0].mxu0
    %v1479 = vadd.f32 0.0, %v1478
    %v1480 = vpop.f32.mrb[0].mxu0
    %v1481 = vadd.f32 0.0, %v1480
    %v1482 = vpop.f32.mrb[0].mxu0
    %v1483 = vadd.f32 0.0, %v1482
    %v1484 = vpop.f32.mrb[0].mxu0
    %v1485 = vadd.f32 0.0, %v1484
    %1486 = vdwg.mxu0
    %1487 = vmatprep.subr.bf16.mxu0 %v943
    %1488 = vmatpush1.bf16.msra.mxu0 %v942
    %1489 = vmatprep.subr.bf16.mxu0 %v947
    %1490 = vmatpush1.bf16.msra.mxu0 %v946
    %1491 = vmatprep.subr.bf16.mxu0 %v951
    %1492 = vmatpush1.bf16.msra.mxu0 %v950
    %1493 = vmatprep.subr.bf16.mxu0 %v955
    %1494 = vmatpush1.bf16.msra.mxu0 %v954
    %1495 = vmatprep.subr.bf16.mxu0 %v959
    %1496 = vmatpush1.bf16.msra.mxu0 %v958
    %1497 = vmatprep.subr.bf16.mxu0 %v963
    %1498 = vmatpush1.bf16.msra.mxu0 %v962
    %1499 = vmatprep.subr.bf16.mxu0 %v967
    %1500 = vmatpush1.bf16.msra.mxu0 %v966
    %1501 = vmatprep.subr.bf16.mxu0 %v971
    %1502 = vmatpush1.bf16.msra.mxu0 %v970
    %1503 = vmatprep.subr.bf16.mxu0 %v975
    %1504 = vmatpush1.bf16.msra.mxu0 %v974
    %1505 = vmatprep.subr.bf16.mxu0 %v979
    %1506 = vmatpush1.bf16.msra.mxu0 %v978
    %1507 = vmatprep.subr.bf16.mxu0 %v983
    %1508 = vmatpush1.bf16.msra.mxu0 %v982
    %1509 = vmatprep.subr.bf16.mxu0 %v987
    %1510 = vmatpush1.bf16.msra.mxu0 %v986
    %1511 = vmatprep.subr.bf16.mxu0 %v991
    %1512 = vmatpush1.bf16.msra.mxu0 %v990
    %1513 = vmatprep.subr.bf16.mxu0 %v995
    %1514 = vmatpush1.bf16.msra.mxu0 %v994
    %1515 = vmatprep.subr.bf16.mxu0 %v999
    %1516 = vmatpush1.bf16.msra.mxu0 %v998
    %1517 = vmatprep.subr.bf16.mxu0 %v1003
    %1518 = vmatpush1.bf16.msra.mxu0 %v1002
    %1519 = vmatprep.mubr.bf16.mxu0 %v88
    %1520 = vmatmul.mubr.bf16.gmra.mrb[0].mxu0 %v87
    %v1521 = vpop.f32.mrb[0].mxu0
    %v1522 = vadd.f32 %v1479, %v1521
    %v1523 = vpop.f32.mrb[0].mxu0
    %v1524 = vadd.f32 %v1481, %v1523
    %v1525 = vpop.f32.mrb[0].mxu0
    %v1526 = vadd.f32 %v1483, %v1525
    %v1527 = vpop.f32.mrb[0].mxu0
    %v1528 = vadd.f32 %v1485, %v1527
    %1529 = vdwg.mxu0
    %1530 = vmatprep.subr.bf16.mxu0 %v1007
    %1531 = vmatpush1.bf16.msra.mxu0 %v1006
    %1532 = vmatprep.subr.bf16.mxu0 %v1011
    %1533 = vmatpush1.bf16.msra.mxu0 %v1010
    %1534 = vmatprep.subr.bf16.mxu0 %v1015
    %1535 = vmatpush1.bf16.msra.mxu0 %v1014
    %1536 = vmatprep.subr.bf16.mxu0 %v1019
    %1537 = vmatpush1.bf16.msra.mxu0 %v1018
    %1538 = vmatprep.subr.bf16.mxu0 %v1023
    %1539 = vmatpush1.bf16.msra.mxu0 %v1022
    %1540 = vmatprep.subr.bf16.mxu0 %v1027
    %1541 = vmatpush1.bf16.msra.mxu0 %v1026
    %1542 = vmatprep.subr.bf16.mxu0 %v1031
    %1543 = vmatpush1.bf16.msra.mxu0 %v1030
    %1544 = vmatprep.subr.bf16.mxu0 %v1035
    %1545 = vmatpush1.bf16.msra.mxu0 %v1034
    %1546 = vmatprep.subr.bf16.mxu0 %v1039
    %1547 = vmatpush1.bf16.msra.mxu0 %v1038
    %1548 = vmatprep.subr.bf16.mxu0 %v1043
    %1549 = vmatpush1.bf16.msra.mxu0 %v1042
    %1550 = vmatprep.subr.bf16.mxu0 %v1047
    %1551 = vmatpush1.bf16.msra.mxu0 %v1046
    %1552 = vmatprep.subr.bf16.mxu0 %v1051
    %1553 = vmatpush1.bf16.msra.mxu0 %v1050
    %1554 = vmatprep.subr.bf16.mxu0 %v1055
    %1555 = vmatpush1.bf16.msra.mxu0 %v1054
    %1556 = vmatprep.subr.bf16.mxu0 %v1059
    %1557 = vmatpush1.bf16.msra.mxu0 %v1058
    %1558 = vmatprep.subr.bf16.mxu0 %v1063
    %1559 = vmatpush1.bf16.msra.mxu0 %v1062
    %1560 = vmatprep.subr.bf16.mxu0 %v1067
    %1561 = vmatpush1.bf16.msra.mxu0 %v1066
    %1562 = vmatprep.mubr.bf16.mxu0 %v90
    %1563 = vmatmul.mubr.bf16.gmra.mrb[0].mxu0 %v89
    %v1564 = vpop.f32.mrb[0].mxu0
    %v1565 = vadd.f32 %v1522, %v1564
    %v1566 = vpop.f32.mrb[0].mxu0
    %v1567 = vadd.f32 %v1524, %v1566
    %v1568 = vpop.f32.mrb[0].mxu0
    %v1569 = vadd.f32 %v1526, %v1568
    %v1570 = vpop.f32.mrb[0].mxu0
    %v1571 = vadd.f32 %v1528, %v1570
    %1572 = vdwg.mxu0
    %1573 = vmatprep.subr.bf16.mxu0 %v1071
    %1574 = vmatpush1.bf16.msra.mxu0 %v1070
    %1575 = vmatprep.subr.bf16.mxu0 0
    %1576 = vmatpush1.bf16.msra.mxu0 0
    %1577 = vmatprep.subr.bf16.mxu0 0
    %1578 = vmatpush1.bf16.msra.mxu0 0
    %1579 = vmatprep.subr.bf16.mxu0 0
    %1580 = vmatpush1.bf16.msra.mxu0 0
    %1581 = vmatprep.subr.bf16.mxu0 0
    %1582 = vmatpush1.bf16.msra.mxu0 0
    %1583 = vmatprep.subr.bf16.mxu0 0
    %1584 = vmatpush1.bf16.msra.mxu0 0
    %1585 = vmatprep.subr.bf16.mxu0 0
    %1586 = vmatpush1.bf16.msra.mxu0 0
    %1587 = vmatprep.subr.bf16.mxu0 0
    %1588 = vmatpush1.bf16.msra.mxu0 0
    %1589 = vmatprep.subr.bf16.mxu0 0
    %1590 = vmatpush1.bf16.msra.mxu0 0
    %1591 = vmatprep.subr.bf16.mxu0 0
    %1592 = vmatpush1.bf16.msra.mxu0 0
    %1593 = vmatprep.subr.bf16.mxu0 0
    %1594 = vmatpush1.bf16.msra.mxu0 0
    %1595 = vmatprep.subr.bf16.mxu0 0
    %1596 = vmatpush1.bf16.msra.mxu0 0
    %1597 = vmatprep.subr.bf16.mxu0 0
    %1598 = vmatpush1.bf16.msra.mxu0 0
    %1599 = vmatprep.subr.bf16.mxu0 0
    %1600 = vmatpush1.bf16.msra.mxu0 0
    %1601 = vmatprep.subr.bf16.mxu0 0
    %1602 = vmatpush1.bf16.msra.mxu0 0
    %1603 = vmatprep.subr.bf16.mxu0 0
    %1604 = vmatpush1.bf16.msra.mxu0 0
    %1605 = vmatprep.mubr.bf16.mxu0 0
    %1606 = vmatmul.mubr.bf16.gmra.mrb[0].mxu0 %v1270
    %v1607 = vpop.f32.mrb[0].mxu0
    %v1608 = vadd.f32 %v1565, %v1607
    %v1609 = vpop.f32.mrb[0].mxu0
    %v1610 = vadd.f32 %v1567, %v1609
    %v1611 = vpop.f32.mrb[0].mxu0
    %v1612 = vadd.f32 %v1569, %v1611
    %v1613 = vpop.f32.mrb[0].mxu0
    %v1614 = vadd.f32 %v1571, %v1613
    %1615 = vdwg.mxu0
    %v1616 = vpack.c.bf16 %v1440, %v1436
    %v1617 = vpack.c.bf16 %v1442, %v1438
    %v1618 = vpack.c.bf16 %v1612, %v1608
    %v1619 = vpack.c.bf16 %v1614, %v1610
    %v1620 = vld [vmem:[%s2] sm:$0xf]
    %v1622 = vlaneseq
    %v1623 = vshrl.u32 %v1622, 7
    %v1624 = vsub.s32 0, %v1623
    %v1625 = vrot.slane %v1620, %v1624
    %v1626 = vlaneseq
    %v1627 = vshrl.u32 %v1626, 7
    %v1628 = vsub.s32 1, %v1627
    %v1629 = vrot.slane %v1620, %v1628
    %v1630 = vlaneseq
    %v1631 = vshrl.u32 %v1630, 7
    %v1632 = vsub.s32 2, %v1631
    %v1633 = vrot.slane %v1620, %v1632
    %v1634 = vlaneseq
    %v1635 = vshrl.u32 %v1634, 7
    %v1636 = vsub.s32 3, %v1635
    %v1637 = vrot.slane %v1620, %v1636
    %v1642 = vpack.c.bf16 %v1625, %v1625
    %v1643 = vpack.c.bf16 %v1629, %v1629
    %v1644 = vpack.c.bf16 %v1633, %v1633
    %v1645 = vpack.c.bf16 %v1637, %v1637
    %v1647 = vpack.i.b16 %v1642, %v1642
    %v1649 = vlaneseq
    %v1650 = vshrl.u32 %v1649, 7
    %v1651 = vsub.s32 0, %v1650
    %v1652 = vrot.slane %v1647, %v1651
    %v1654 = vpack.i.b16 %v1643, %v1643
    %v1656 = vlaneseq
    %v1657 = vshrl.u32 %v1656, 7
    %v1658 = vsub.s32 0, %v1657
    %v1659 = vrot.slane %v1654, %v1658
    %v1661 = vpack.i.b16 %v1644, %v1644
    %v1663 = vlaneseq
    %v1664 = vshrl.u32 %v1663, 7
    %v1665 = vsub.s32 0, %v1664
    %v1666 = vrot.slane %v1661, %v1665
    %v1668 = vpack.i.b16 %v1645, %v1645
    %v1670 = vlaneseq
    %v1671 = vshrl.u32 %v1670, 7
    %v1672 = vsub.s32 0, %v1671
    %v1673 = vrot.slane %v1668, %v1672
    %v1674 = vadd.bf16 %v1616, %v1652
    %v1675 = vadd.bf16 %v1617, %v1659
    %v1676 = vadd.bf16 %v1618, %v1666
    %v1677 = vadd.bf16 %v1619, %v1673
    %v1678 = vmul.bf16 %v1674, 1045249613
    %v1679 = vmul.bf16 %v1675, 1045249613
    %v1680 = vmul.bf16 %v1676, 1045249613
    %v1681 = vmul.bf16 %v1677, 1045249613
    %v1682 = vmax.bf16 %v1674, %v1678
    %v1683 = vmax.bf16 %v1675, %v1679
    %v1684 = vmax.bf16 %v1676, %v1680
    %v1685 = vmax.bf16 %v1677, %v1681
    %v1686 = vld [vmem:[#allocation7] sm:$0xff]
    %v1687 = vld [vmem:[#allocation7 + $0x8] sm:$0xff]
    %v1688 = vld [vmem:[#allocation7 + $0x10] sm:$0xff]
    %v1689 = vld [vmem:[#allocation7 + $0x18] sm:$0xff]
    %v1690 = vld [vmem:[#allocation7 + $0x20] sm:$0xff]
    %v1691 = vld [vmem:[#allocation7 + $0x28] sm:$0xff]
    %v1692 = vld [vmem:[#allocation7 + $0x30] sm:$0xff]
    %v1693 = vld [vmem:[#allocation7 + $0x38] sm:$0xff]
    %v1694 = vld [vmem:[#allocation7 + $0x40] sm:$0xff]
    %v1695 = vld [vmem:[#allocation7 + $0x48] sm:$0xff]
    %v1696 = vld [vmem:[#allocation7 + $0x50] sm:$0xff]
    %v1697 = vld [vmem:[#allocation7 + $0x58] sm:$0xff]
    %v1698 = vld [vmem:[#allocation7 + $0x60] sm:$0xff]
    %v1699 = vld [vmem:[#allocation7 + $0x68] sm:$0xff]
    %v1700 = vld [vmem:[#allocation7 + $0x70] sm:$0xff]
    %v1701 = vld [vmem:[#allocation7 + $0x78] sm:$0xff]
    %v1702 = vld [vmem:[#allocation7 + $0x80] sm:$0xff]
    %v1703 = vld [vmem:[#allocation7 + $0x88] sm:$0xff]
    %v1704 = vld [vmem:[#allocation7 + $0x90] sm:$0xff]
    %v1705 = vld [vmem:[#allocation7 + $0x98] sm:$0xff]
    %v1706 = vld [vmem:[#allocation7 + $0xa0] sm:$0xff]
    %v1707 = vld [vmem:[#allocation7 + $0xa8] sm:$0xff]
    %v1708 = vld [vmem:[#allocation7 + $0xb0] sm:$0xff]
    %v1709 = vld [vmem:[#allocation7 + $0xb8] sm:$0xff]
    %v1710 = vld [vmem:[#allocation7 + $0xc0] sm:$0xff]
    %v1711 = vld [vmem:[#allocation7 + $0xc8] sm:$0xff]
    %v1712 = vld [vmem:[#allocation7 + $0xd0] sm:$0xff]
    %v1713 = vld [vmem:[#allocation7 + $0xd8] sm:$0xff]
    %v1714 = vld [vmem:[#allocation7 + $0xe0] sm:$0xff]
    %v1715 = vld [vmem:[#allocation7 + $0xe8] sm:$0xff]
    %v1716 = vld [vmem:[#allocation7 + $0xf0] sm:$0xff]
    %v1717 = vld [vmem:[#allocation7 + $0xf8] sm:$0xff]
    %v1718 = vld [vmem:[#allocation7 + $0x100] sm:$0xff]
    %v1719 = vld [vmem:[#allocation7 + $0x108] sm:$0xff]
    %v1720 = vld [vmem:[#allocation7 + $0x110] sm:$0xff]
    %v1721 = vld [vmem:[#allocation7 + $0x118] sm:$0xff]
    %v1722 = vld [vmem:[#allocation7 + $0x120] sm:$0xff]
    %v1723 = vld [vmem:[#allocation7 + $0x128] sm:$0xff]
    %v1724 = vld [vmem:[#allocation7 + $0x130] sm:$0xff]
    %v1725 = vld [vmem:[#allocation7 + $0x138] sm:$0xff]
    %v1726 = vld [vmem:[#allocation7 + $0x140] sm:$0xff]
    %v1727 = vld [vmem:[#allocation7 + $0x148] sm:$0xff]
    %v1728 = vld [vmem:[#allocation7 + $0x150] sm:$0xff]
    %v1729 = vld [vmem:[#allocation7 + $0x158] sm:$0xff]
    %v1730 = vld [vmem:[#allocation7 + $0x160] sm:$0xff]
    %v1731 = vld [vmem:[#allocation7 + $0x168] sm:$0xff]
    %v1732 = vld [vmem:[#allocation7 + $0x170] sm:$0xff]
    %v1733 = vld [vmem:[#allocation7 + $0x178] sm:$0xff]
    %v1734 = vld [vmem:[#allocation7 + $0x180] sm:$0xff]
    %v1735 = vld [vmem:[#allocation7 + $0x188] sm:$0xff]
    %v1736 = vld [vmem:[#allocation7 + $0x190] sm:$0xff]
    %v1737 = vld [vmem:[#allocation7 + $0x198] sm:$0xff]
    %v1738 = vld [vmem:[#allocation7 + $0x1a0] sm:$0xff]
    %v1739 = vld [vmem:[#allocation7 + $0x1a8] sm:$0xff]
    %v1740 = vld [vmem:[#allocation7 + $0x1b0] sm:$0xff]
    %v1741 = vld [vmem:[#allocation7 + $0x1b8] sm:$0xff]
    %v1742 = vld [vmem:[#allocation7 + $0x1c0] sm:$0xff]
    %v1743 = vld [vmem:[#allocation7 + $0x1c8] sm:$0xff]
    %v1744 = vld [vmem:[#allocation7 + $0x1d0] sm:$0xff]
    %v1745 = vld [vmem:[#allocation7 + $0x1d8] sm:$0xff]
    %v1746 = vld [vmem:[#allocation7 + $0x1e0] sm:$0xff]
    %v1747 = vld [vmem:[#allocation7 + $0x1e8] sm:$0xff]
    %v1748 = vld [vmem:[#allocation7 + $0x1f0] sm:$0xff]
    %v1749 = vld [vmem:[#allocation7 + $0x1f8] sm:$0xff]
    %v1750 = vld [vmem:[%s4] sm:$0x3]
    %v1752 = vlaneseq
    %v1753 = vshrl.u32 %v1752, 7
    %v1754 = vsub.s32 0, %v1753
    %v1755 = vrot.slane %v1750, %v1754
    %v1756 = vlaneseq
    %v1757 = vshrl.u32 %v1756, 7
    %v1758 = vsub.s32 1, %v1757
    %v1759 = vrot.slane %v1750, %v1758
    %v1826 = vunpack.c.l.b16 %v1686
    %v1827 = vunpack.c.h.b16 %v1686
    %v1828 = vunpack.c.l.b16 %v1687
    %v1829 = vunpack.c.h.b16 %v1687
    %v1830 = vunpack.c.l.b16 %v1688
    %v1831 = vunpack.c.h.b16 %v1688
    %v1832 = vunpack.c.l.b16 %v1689
    %v1833 = vunpack.c.h.b16 %v1689
    %v1834 = vunpack.c.l.b16 %v1690
    %v1835 = vunpack.c.h.b16 %v1690
    %v1836 = vunpack.c.l.b16 %v1691
    %v1837 = vunpack.c.h.b16 %v1691
    %v1838 = vunpack.c.l.b16 %v1692
    %v1839 = vunpack.c.h.b16 %v1692
    %v1840 = vunpack.c.l.b16 %v1693
    %v1841 = vunpack.c.h.b16 %v1693
    %v1842 = vunpack.c.l.b16 %v1694
    %v1843 = vunpack.c.h.b16 %v1694
    %v1844 = vunpack.c.l.b16 %v1695
    %v1845 = vunpack.c.h.b16 %v1695
    %v1846 = vunpack.c.l.b16 %v1696
    %v1847 = vunpack.c.h.b16 %v1696
    %v1848 = vunpack.c.l.b16 %v1697
    %v1849 = vunpack.c.h.b16 %v1697
    %v1850 = vunpack.c.l.b16 %v1698
    %v1851 = vunpack.c.h.b16 %v1698
    %v1852 = vunpack.c.l.b16 %v1699
    %v1853 = vunpack.c.h.b16 %v1699
    %v1854 = vunpack.c.l.b16 %v1700
    %v1855 = vunpack.c.h.b16 %v1700
    %v1856 = vunpack.c.l.b16 %v1701
    %v1857 = vunpack.c.h.b16 %v1701
    %v1858 = vunpack.c.l.b16 %v1702
    %v1859 = vunpack.c.h.b16 %v1702
    %v1860 = vunpack.c.l.b16 %v1703
    %v1861 = vunpack.c.h.b16 %v1703
    %v1862 = vunpack.c.l.b16 %v1704
    %v1863 = vunpack.c.h.b16 %v1704
    %v1864 = vunpack.c.l.b16 %v1705
    %v1865 = vunpack.c.h.b16 %v1705
    %v1866 = vunpack.c.l.b16 %v1706
    %v1867 = vunpack.c.h.b16 %v1706
    %v1868 = vunpack.c.l.b16 %v1707
    %v1869 = vunpack.c.h.b16 %v1707
    %v1870 = vunpack.c.l.b16 %v1708
    %v1871 = vunpack.c.h.b16 %v1708
    %v1872 = vunpack.c.l.b16 %v1709
    %v1873 = vunpack.c.h.b16 %v1709
    %v1874 = vunpack.c.l.b16 %v1710
    %v1875 = vunpack.c.h.b16 %v1710
    %v1876 = vunpack.c.l.b16 %v1711
    %v1877 = vunpack.c.h.b16 %v1711
    %v1878 = vunpack.c.l.b16 %v1712
    %v1879 = vunpack.c.h.b16 %v1712
    %v1880 = vunpack.c.l.b16 %v1713
    %v1881 = vunpack.c.h.b16 %v1713
    %v1882 = vunpack.c.l.b16 %v1714
    %v1883 = vunpack.c.h.b16 %v1714
    %v1884 = vunpack.c.l.b16 %v1715
    %v1885 = vunpack.c.h.b16 %v1715
    %v1886 = vunpack.c.l.b16 %v1716
    %v1887 = vunpack.c.h.b16 %v1716
    %v1888 = vunpack.c.l.b16 %v1717
    %v1889 = vunpack.c.h.b16 %v1717
    %v1890 = vunpack.c.l.b16 %v1718
    %v1891 = vunpack.c.h.b16 %v1718
    %v1892 = vunpack.c.l.b16 %v1719
    %v1893 = vunpack.c.h.b16 %v1719
    %v1894 = vunpack.c.l.b16 %v1720
    %v1895 = vunpack.c.h.b16 %v1720
    %v1896 = vunpack.c.l.b16 %v1721
    %v1897 = vunpack.c.h.b16 %v1721
    %v1898 = vunpack.c.l.b16 %v1722
    %v1899 = vunpack.c.h.b16 %v1722
    %v1900 = vunpack.c.l.b16 %v1723
    %v1901 = vunpack.c.h.b16 %v1723
    %v1902 = vunpack.c.l.b16 %v1724
    %v1903 = vunpack.c.h.b16 %v1724
    %v1904 = vunpack.c.l.b16 %v1725
    %v1905 = vunpack.c.h.b16 %v1725
    %v1906 = vunpack.c.l.b16 %v1726
    %v1907 = vunpack.c.h.b16 %v1726
    %v1908 = vunpack.c.l.b16 %v1727
    %v1909 = vunpack.c.h.b16 %v1727
    %v1910 = vunpack.c.l.b16 %v1728
    %v1911 = vunpack.c.h.b16 %v1728
    %v1912 = vunpack.c.l.b16 %v1729
    %v1913 = vunpack.c.h.b16 %v1729
    %v1914 = vunpack.c.l.b16 %v1730
    %v1915 = vunpack.c.h.b16 %v1730
    %v1916 = vunpack.c.l.b16 %v1731
    %v1917 = vunpack.c.h.b16 %v1731
    %v1918 = vunpack.c.l.b16 %v1732
    %v1919 = vunpack.c.h.b16 %v1732
    %v1920 = vunpack.c.l.b16 %v1733
    %v1921 = vunpack.c.h.b16 %v1733
    %v1922 = vunpack.c.l.b16 %v1734
    %v1923 = vunpack.c.h.b16 %v1734
    %v1924 = vunpack.c.l.b16 %v1735
    %v1925 = vunpack.c.h.b16 %v1735
    %v1926 = vunpack.c.l.b16 %v1736
    %v1927 = vunpack.c.h.b16 %v1736
    %v1928 = vunpack.c.l.b16 %v1737
    %v1929 = vunpack.c.h.b16 %v1737
    %v1930 = vunpack.c.l.b16 %v1738
    %v1931 = vunpack.c.h.b16 %v1738
    %v1932 = vunpack.c.l.b16 %v1739
    %v1933 = vunpack.c.h.b16 %v1739
    %v1934 = vunpack.c.l.b16 %v1740
    %v1935 = vunpack.c.h.b16 %v1740
    %v1936 = vunpack.c.l.b16 %v1741
    %v1937 = vunpack.c.h.b16 %v1741
    %v1938 = vunpack.c.l.b16 %v1742
    %v1939 = vunpack.c.h.b16 %v1742
    %v1940 = vunpack.c.l.b16 %v1743
    %v1941 = vunpack.c.h.b16 %v1743
    %v1942 = vunpack.c.l.b16 %v1744
    %v1943 = vunpack.c.h.b16 %v1744
    %v1944 = vunpack.c.l.b16 %v1745
    %v1945 = vunpack.c.h.b16 %v1745
    %v1946 = vunpack.c.l.b16 %v1746
    %v1947 = vunpack.c.h.b16 %v1746
    %v1948 = vunpack.c.l.b16 %v1747
    %v1949 = vunpack.c.h.b16 %v1747
    %v1950 = vunpack.c.l.b16 %v1748
    %v1951 = vunpack.c.h.b16 %v1748
    %v1952 = vunpack.c.l.b16 %v1749
    %v1953 = vunpack.c.h.b16 %v1749
    %v1954 = vpack.c.b16 %v1828, %v1826
    %v1955 = vpack.c.b16 %v1829, %v1827
    %v1956 = vpack.c.b16 %v1832, %v1830
    %v1957 = vpack.c.b16 %v1833, %v1831
    %v1958 = vpack.c.b16 %v1836, %v1834
    %v1959 = vpack.c.b16 %v1837, %v1835
    %v1960 = vpack.c.b16 %v1840, %v1838
    %v1961 = vpack.c.b16 %v1841, %v1839
    %v1962 = vpack.c.b16 %v1844, %v1842
    %v1963 = vpack.c.b16 %v1845, %v1843
    %v1964 = vpack.c.b16 %v1848, %v1846
    %v1965 = vpack.c.b16 %v1849, %v1847
    %v1966 = vpack.c.b16 %v1852, %v1850
    %v1967 = vpack.c.b16 %v1853, %v1851
    %v1968 = vpack.c.b16 %v1856, %v1854
    %v1969 = vpack.c.b16 %v1857, %v1855
    %v1970 = vpack.c.b16 %v1860, %v1858
    %v1971 = vpack.c.b16 %v1861, %v1859
    %v1972 = vpack.c.b16 %v1864, %v1862
    %v1973 = vpack.c.b16 %v1865, %v1863
    %v1974 = vpack.c.b16 %v1868, %v1866
    %v1975 = vpack.c.b16 %v1869, %v1867
    %v1976 = vpack.c.b16 %v1872, %v1870
    %v1977 = vpack.c.b16 %v1873, %v1871
    %v1978 = vpack.c.b16 %v1876, %v1874
    %v1979 = vpack.c.b16 %v1877, %v1875
    %v1980 = vpack.c.b16 %v1880, %v1878
    %v1981 = vpack.c.b16 %v1881, %v1879
    %v1982 = vpack.c.b16 %v1884, %v1882
    %v1983 = vpack.c.b16 %v1885, %v1883
    %v1984 = vpack.c.b16 %v1888, %v1886
    %v1985 = vpack.c.b16 %v1889, %v1887
    %v1986 = vpack.c.b16 %v1892, %v1890
    %v1987 = vpack.c.b16 %v1893, %v1891
    %v1988 = vpack.c.b16 %v1896, %v1894
    %v1989 = vpack.c.b16 %v1897, %v1895
    %v1990 = vpack.c.b16 %v1900, %v1898
    %v1991 = vpack.c.b16 %v1901, %v1899
    %v1992 = vpack.c.b16 %v1904, %v1902
    %v1993 = vpack.c.b16 %v1905, %v1903
    %v1994 = vpack.c.b16 %v1908, %v1906
    %v1995 = vpack.c.b16 %v1909, %v1907
    %v1996 = vpack.c.b16 %v1912, %v1910
    %v1997 = vpack.c.b16 %v1913, %v1911
    %v1998 = vpack.c.b16 %v1916, %v1914
    %v1999 = vpack.c.b16 %v1917, %v1915
    %v2000 = vpack.c.b16 %v1920, %v1918
    %v2001 = vpack.c.b16 %v1921, %v1919
    %v2002 = vpack.c.b16 %v1924, %v1922
    %v2003 = vpack.c.b16 %v1925, %v1923
    %v2004 = vpack.c.b16 %v1928, %v1926
    %v2005 = vpack.c.b16 %v1929, %v1927
    %v2006 = vpack.c.b16 %v1932, %v1930
    %v2007 = vpack.c.b16 %v1933, %v1931
    %v2008 = vpack.c.b16 %v1936, %v1934
    %v2009 = vpack.c.b16 %v1937, %v1935
    %v2010 = vpack.c.b16 %v1940, %v1938
    %v2011 = vpack.c.b16 %v1941, %v1939
    %v2012 = vpack.c.b16 %v1944, %v1942
    %v2013 = vpack.c.b16 %v1945, %v1943
    %v2014 = vpack.c.b16 %v1948, %v1946
    %v2015 = vpack.c.b16 %v1949, %v1947
    %v2016 = vpack.c.b16 %v1952, %v1950
    %v2017 = vpack.c.b16 %v1953, %v1951
    %2082 = vmatprep.subr.bf16.mxu0 %v1955
    %2083 = vmatpush1.bf16.msra.mxu0 %v1954
    %2084 = vmatprep.subr.bf16.mxu0 %v1957
    %2085 = vmatpush1.bf16.msra.mxu0 %v1956
    %2086 = vmatprep.subr.bf16.mxu0 %v1959
    %2087 = vmatpush1.bf16.msra.mxu0 %v1958
    %2088 = vmatprep.subr.bf16.mxu0 %v1961
    %2089 = vmatpush1.bf16.msra.mxu0 %v1960
    %2090 = vmatprep.subr.bf16.mxu0 %v1963
    %2091 = vmatpush1.bf16.msra.mxu0 %v1962
    %2092 = vmatprep.subr.bf16.mxu0 %v1965
    %2093 = vmatpush1.bf16.msra.mxu0 %v1964
    %2094 = vmatprep.subr.bf16.mxu0 %v1967
    %2095 = vmatpush1.bf16.msra.mxu0 %v1966
    %2096 = vmatprep.subr.bf16.mxu0 %v1969
    %2097 = vmatpush1.bf16.msra.mxu0 %v1968
    %2098 = vmatprep.subr.bf16.mxu0 %v1971
    %2099 = vmatpush1.bf16.msra.mxu0 %v1970
    %2100 = vmatprep.subr.bf16.mxu0 %v1973
    %2101 = vmatpush1.bf16.msra.mxu0 %v1972
    %2102 = vmatprep.subr.bf16.mxu0 %v1975
    %2103 = vmatpush1.bf16.msra.mxu0 %v1974
    %2104 = vmatprep.subr.bf16.mxu0 %v1977
    %2105 = vmatpush1.bf16.msra.mxu0 %v1976
    %2106 = vmatprep.subr.bf16.mxu0 %v1979
    %2107 = vmatpush1.bf16.msra.mxu0 %v1978
    %2108 = vmatprep.subr.bf16.mxu0 %v1981
    %2109 = vmatpush1.bf16.msra.mxu0 %v1980
    %2110 = vmatprep.subr.bf16.mxu0 %v1983
    %2111 = vmatpush1.bf16.msra.mxu0 %v1982
    %2112 = vmatprep.subr.bf16.mxu0 %v1985
    %2113 = vmatpush1.bf16.msra.mxu0 %v1984
    %2114 = vmatprep.mubr.bf16.mxu0 %v1683
    %2115 = vmatmul.mubr.bf16.gmra.mrb[0].mxu0 %v1682
    %v2116 = vpop.f32.mrb[0].mxu0
    %v2117 = vadd.f32 %v1755, %v2116
    %v2118 = vpop.f32.mrb[0].mxu0
    %v2119 = vadd.f32 %v1759, %v2118
    %v2120 = vpop.f32.mrb[0].mxu0
    %v2121 = vadd.f32 %v1755, %v2120
    %v2122 = vpop.f32.mrb[0].mxu0
    %v2123 = vadd.f32 %v1759, %v2122
    %2124 = vdwg.mxu0
    %2125 = vmatprep.subr.bf16.mxu0 %v1987
    %2126 = vmatpush1.bf16.msra.mxu0 %v1986
    %2127 = vmatprep.subr.bf16.mxu0 %v1989
    %2128 = vmatpush1.bf16.msra.mxu0 %v1988
    %2129 = vmatprep.subr.bf16.mxu0 %v1991
    %2130 = vmatpush1.bf16.msra.mxu0 %v1990
    %2131 = vmatprep.subr.bf16.mxu0 %v1993
    %2132 = vmatpush1.bf16.msra.mxu0 %v1992
    %2133 = vmatprep.subr.bf16.mxu0 %v1995
    %2134 = vmatpush1.bf16.msra.mxu0 %v1994
    %2135 = vmatprep.subr.bf16.mxu0 %v1997
    %2136 = vmatpush1.bf16.msra.mxu0 %v1996
    %2137 = vmatprep.subr.bf16.mxu0 %v1999
    %2138 = vmatpush1.bf16.msra.mxu0 %v1998
    %2139 = vmatprep.subr.bf16.mxu0 %v2001
    %2140 = vmatpush1.bf16.msra.mxu0 %v2000
    %2141 = vmatprep.subr.bf16.mxu0 %v2003
    %2142 = vmatpush1.bf16.msra.mxu0 %v2002
    %2143 = vmatprep.subr.bf16.mxu0 %v2005
    %2144 = vmatpush1.bf16.msra.mxu0 %v2004
    %2145 = vmatprep.subr.bf16.mxu0 %v2007
    %2146 = vmatpush1.bf16.msra.mxu0 %v2006
    %2147 = vmatprep.subr.bf16.mxu0 %v2009
    %2148 = vmatpush1.bf16.msra.mxu0 %v2008
    %2149 = vmatprep.subr.bf16.mxu0 %v2011
    %2150 = vmatpush1.bf16.msra.mxu0 %v2010
    %2151 = vmatprep.subr.bf16.mxu0 %v2013
    %2152 = vmatpush1.bf16.msra.mxu0 %v2012
    %2153 = vmatprep.subr.bf16.mxu0 %v2015
    %2154 = vmatpush1.bf16.msra.mxu0 %v2014
    %2155 = vmatprep.subr.bf16.mxu0 %v2017
    %2156 = vmatpush1.bf16.msra.mxu0 %v2016
    %2157 = vmatprep.mubr.bf16.mxu0 %v1685
    %2158 = vmatmul.mubr.bf16.gmra.mrb[0].mxu0 %v1684
    %v2159 = vpop.f32.mrb[0].mxu0
    %v2160 = vadd.f32 %v2117, %v2159
    %v2161 = vpop.f32.mrb[0].mxu0
    %v2162 = vadd.f32 %v2119, %v2161
    %v2163 = vpop.f32.mrb[0].mxu0
    %v2164 = vadd.f32 %v2121, %v2163
    %v2165 = vpop.f32.mrb[0].mxu0
    %v2166 = vadd.f32 %v2123, %v2165
    %2167 = vdwg.mxu0
    %v2168 = vmul.f32 %v2160, 0.2
    %v2169 = vmul.f32 %v2162, 0.2
    %v2170 = vmul.f32 %v2164, 0.2
    %v2171 = vmul.f32 %v2166, 0.2
    %v2172 = vmax.f32 %v2160, %v2168
    %v2173 = vmax.f32 %v2162, %v2169
    %v2174 = vmax.f32 %v2164, %v2170
    %v2175 = vmax.f32 %v2166, %v2171
    %v2176 = vld [vmem:[%s5] sm:$0x3]
    %v2178 = vlaneseq
    %v2179 = vshrl.u32 %v2178, 7
    %v2180 = vsub.s32 0, %v2179
    %v2181 = vrot.slane %v2176, %v2180
    %v2182 = vlaneseq
    %v2183 = vshrl.u32 %v2182, 7
    %v2184 = vsub.s32 1, %v2183
    %v2185 = vrot.slane %v2176, %v2184
    %v2188 = vmul.f32 %v2172, %v2181
    %v2189 = vmul.f32 %v2173, %v2185
    %v2190 = vmul.f32 %v2174, %v2181
    %v2191 = vmul.f32 %v2175, %v2185
    %v2192 = vadd.f32 %v2188, %v2189
    %2193 = vadd.xlane.f32.xlu0 %v2192
    %v2194 = vpop.xlane.xlu0 %2193
    %v2195 = vadd.f32 %v2190, %v2191
    %2196 = vadd.xlane.f32.xlu0 %v2195
    %v2197 = vpop.xlane.xlu0 %2196
    %v2198 = vld [vmem:[#allocation2] sm:$0x1]
    %v2200 = vlaneseq
    %v2201 = vshrl.u32 %v2200, 7
    %v2202 = vsub.s32 0, %v2201
    %v2203 = vrot.slane %v2198, %v2202
    %v2205 = vadd.f32 %v2194, %v2203
    %v2206 = vadd.f32 %v2197, %v2203
    %v2207 = vxor.u32 %v2205, 2147483648
    %v2208 = vxor.u32 %v2206, 2147483648
    %v2209 = vmul.f32 %v2207, 1.442695
    %v2210 = vpow.pop %v2209
    %v2211 = vmul.f32 %v2208, 1.442695
    %v2212 = vpow.pop %v2211
    %v2213 = vadd.f32 %v2210, 1.0
    %v2214 = vadd.f32 %v2212, 1.0
    %v2215 = vrcp.pop %v2213
    %v2216 = vmul.f32 1.0, %v2215
    %v2217 = vrcp.pop %v2214
    %v2218 = vmul.f32 1.0, %v2217
    %vm2219 = vcmask 7168
    %2220 = vst.msk [vmem:[%s7] sm:$0xff] %vm2219, %v2216
    %2221 = vst.msk [vmem:[%s7 + $0x8] sm:$0xff] %vm2219, %v2218
    // Predicated region
    $region42: #{tpu_custom_call.1} parent=1 // pred_check
      _
    $region43: #{tpu_custom_call.1} parent=1 // pred_check_branch
      %2223 = sbr.rel (0) target = $region45
    $region44: #{tpu_custom_call.1} parent=1 // pred_region
      _
    $region45: #{tpu_custom_call.1} parent=1 // pred_fallthru
      _
    // Predicated region
    $region46: #{tpu_custom_call.1} parent=1 // pred_check
      _
    $region47: #{tpu_custom_call.1} parent=1 // pred_check_branch
      %2225 = sbr.rel (0) target = $region49
    $region48: #{tpu_custom_call.1} parent=1 // pred_region
      _
    $region49: #{tpu_custom_call.1} parent=1 // pred_fallthru
      _
    %2226 = vsyncpa [#allocation4], 1
    %2227 = vsyncpa [#allocation6], 1

</llo_original>
